<compile_context>
chip_gen: v5e
topology: v5e:2x2
jax: 0.10.0
libtpu: 0.0.40
codegen_flags: <defaults>
</compile_context>

<pallas_src>
import numpy as np
import jax
import jax.numpy as jnp
from jax.experimental import pallas as pl
from jax.experimental.pallas import tpu as pltpu

HIDDEN = 32              # v_hidden_dim (small test size; PyTorch default is 256)
POS_L = 8                # v_pos_encoding
IN_DIM = 2 + 4 * POS_L   # 34
FEAT_K = 40              # fused layer-1 contraction depth (five 8-row groups)


# ----------------------------- Pallas kernel -----------------------------

def mlp_kernel(xy_ref, w1_ref, w_ref, b_ref, o_ref):
    xy = xy_ref[0]                           # (2, TM) f32, rows = [x; y]
    TM = xy.shape[1]
    pi = jnp.float32(np.pi)

    # One dense 8-sublane seed block of angles (x/y interleaved, k = 0..3):
    #   rows = [pi*x, pi*y, 2pi*x, 2pi*y, 4pi*x, 4pi*y, 8pi*x, 8pi*y]
    ang = jnp.concatenate([xy, 2.0 * xy, 4.0 * xy, 8.0 * xy], axis=0) * pi
    s_lo = jnp.sin(ang)                      # sin @ k=0..3  (EUP)
    c_lo = jnp.cos(ang)                      # cos @ k=0..3  (EUP)

    # Exact double-angle recurrence on the VPU: 4 doublings -> k = 4..7.
    s, c = s_lo, c_lo
    for _ in range(4):
        s, c = 2.0 * s * c, 1.0 - 2.0 * s * s
    s_hi, c_hi = s, c

    bf = jnp.bfloat16
    feat = jnp.concatenate(
        [xy, jnp.zeros((6, TM), jnp.float32), s_lo, s_hi, c_lo, c_hi],
        axis=0).astype(bf)                   # (40, TM), sublane-group aligned

    def mm(w, a):                            # bf16 MXU matmul, f32 accumulation
        return jnp.dot(w, a, preferred_element_type=jnp.float32)

    # Layer 1: single fused K=40 matmul (enc_w + column permutation baked into w1).
    h = jnp.maximum(mm(w1_ref[...], feat) + b_ref[0], 0.0)           # (HP, TM)
    # Layers 2..5 from the packed weight/bias blobs.
    h = jnp.maximum(mm(w_ref[0], h.astype(bf)) + b_ref[1], 0.0)
    h = jnp.maximum(mm(w_ref[1], h.astype(bf)) + b_ref[2], 0.0)
    h = jnp.maximum(mm(w_ref[2], h.astype(bf)) + b_ref[3], 0.0)
    out = mm(w_ref[3], h.astype(bf)) + b_ref[4]                       # (HP, TM)
    o_ref[0] = jax.nn.sigmoid(out[:3, :])                            # (3, TM)


def run_mlp(xy_cm, w1f, wrest, bblob, tm=4096):
    """xy_cm: (B, 2, HW) f32.  Returns RGB channel-major (B, 3, HW) f32."""
    B, _, HW = xy_cm.shape

    if HW <= tm:
        tm_eff, HW_pad = HW, HW
    else:
        tm = max(128, (tm // 128) * 128)
        tm_eff = next((c for c in range(tm, 0, -128) if HW % c == 0), None)
        if tm_eff is None:
            # Ragged fallback: pad once and slice the tail afterwards.
            tm_eff = tm
            HW_pad = int(pl.cdiv(HW, tm_eff)) * tm_eff
            xy_cm = jnp.pad(xy_cm, ((0, 0), (0, 0), (0, HW_pad - HW)))
        else:
            HW_pad = HW
    grid = (B, HW_pad // tm_eff)

    in_specs = [
        pl.BlockSpec((1, 2, tm_eff), lambda s, j: (s, 0, j)),
        pl.BlockSpec(w1f.shape,   lambda s, j: (0, 0)),
        pl.BlockSpec(wrest.shape, lambda s, j: (0, 0, 0)),
        pl.BlockSpec(bblob.shape, lambda s, j: (0, 0, 0)),
    ]
    out_spec = pl.BlockSpec((1, 3, tm_eff), lambda s, j: (s, 0, j))

    out = pl.pallas_call(
        mlp_kernel,
        out_shape=jax.ShapeDtypeStruct((B, 3, HW_pad), jnp.float32),
        grid_spec=pltpu.PrefetchScalarGridSpec(
            num_scalar_prefetch=0,
            grid=grid,
            in_specs=in_specs,
            out_specs=out_spec),
        compiler_params=pltpu.CompilerParams(
            dimension_semantics=("parallel", "parallel"),
            vmem_limit_bytes=64 * 1024 * 1024),
    )(xy_cm, w1f, wrest, bblob)

    if HW_pad != HW:
        out = out[..., :HW]
    return out


# ----------------------- parameter repacking (wrapper) --------------------

def _fused_col_perm():
    """Original W1 input-column index for each of the 40 fused feature rows (-1 => zero).

    Original (PyTorch) feature column layout:
      0:x, 1:y, 2..9:sin_x(k0..7), 10..17:cos_x, 18..25:sin_y, 26..33:cos_y
    Fused feature row layout produced by the kernel:
      0..7  : [x, y, 0,0,0,0,0,0]
      8..15 : sin, k=0..3, x/y interleaved
      16..23: sin, k=4..7, x/y interleaved
      24..31: cos, k=0..3, x/y interleaved
      32..39: cos, k=4..7, x/y interleaved
    """
    perm = [-1] * FEAT_K
    perm[0], perm[1] = 0, 1
    for k in range(POS_L):
        j = (8 if k < 4 else 16) + 2 * (k % 4)      # sin block
        perm[j] = 2 + k                              # sin_x(k)
        perm[j + 1] = 2 + 2 * POS_L + k              # sin_y(k)
        j = (24 if k < 4 else 32) + 2 * (k % 4)      # cos block
        perm[j] = 2 + POS_L + k                      # cos_x(k)
        perm[j + 1] = 2 + 3 * POS_L + k              # cos_y(k)
    return perm


def prepare_kernel_params(params, enc_w):
    """Fold enc_w into W1, permute/zero-pad W1 columns into the fused (HP, 40)
    layout, and pack the remaining layers into one bf16 weight blob and one
    f32 bias blob."""
    w1, b1, w2, b2, w3, b3, w4, b4, w5, b5 = params   # w:(din,dout)  b:(1,dout)
    H = w1.shape[1]
    HP = ((H + 7) // 8) * 8
    bf = jnp.bfloat16

    col_scale = jnp.concatenate(
        [jnp.ones((2,), jnp.float32),
         jnp.tile(jnp.asarray(enc_w, jnp.float32), 4)])               # (34,)
    w1t = (w1 * col_scale[:, None]).T                                  # (H, 34)

    cols = []
    for c in _fused_col_perm():
        cols.append(w1t[:, c] if c >= 0 else jnp.zeros((H,), jnp.float32))
    w1f = jnp.stack(cols, axis=1)                                      # (H, 40)
    w1f = jnp.pad(w1f, ((0, HP - H), (0, 0))).astype(bf)               # (HP, 40)

    def pad2(w):
        return jnp.pad(w, ((0, HP - w.shape[0]), (0, HP - w.shape[1])))

    wrest = jnp.stack([pad2(w2.T), pad2(w3.T), pad2(w4.T), pad2(w5.T)],
                      axis=0).astype(bf)                               # (4, HP, HP)

    def padb(b):
        v = b.reshape(-1)
        return jnp.pad(v, (0, HP - v.shape[0]))[:, None]               # (HP, 1)

    bblob = jnp.stack([padb(b1), padb(b2), padb(b3), padb(b4), padb(b5)],
                      axis=0).astype(jnp.float32)                      # (5, HP, 1)
    return w1f, wrest, bblob


# ------------------------------- JAX glue --------------------------------

def get_normalized_pixel_grid_crop_cm(H, W, crop, num_sample):
    """Channel-major normalized crop grid: (B, 2, crop*crop), rows = [x; y]."""
    y0, y1 = H // 2 - crop // 2, H // 2 + crop // 2
    x0, x1 = W // 2 - crop // 2, W // 2 + crop // 2
    y_range = ((jnp.arange(y0, y1, dtype=jnp.float32) + 0.5) / H * 2 - 1) * (H / max(H, W))
    x_range = ((jnp.arange(x0, x1, dtype=jnp.float32) + 0.5) / W * 2 - 1) * (W / max(H, W))
    Y, X = jnp.meshgrid(y_range, x_range, indexing="ij")
    xy = jnp.stack([X.reshape(-1), Y.reshape(-1)], axis=0)             # (2, HW)
    return jnp.tile(xy[None], (num_sample, 1, 1))                      # (B, 2, HW)


def sl3_to_SL3(h):
    # h: (B, 8) sl(3) parameters -> (B, 3, 3) homographies via matrix exponential
    # TODO(synk): tiny 3x3 expm kept in plain JAX (no meaningful Pallas win).
    h1, h2, h3, h4, h5, h6, h7, h8 = [h[:, i] for i in range(8)]
    A = jnp.stack([
        jnp.stack([h5, h3, h1], axis=-1),
        jnp.stack([h4, -h5 - h6, h2], axis=-1),
        jnp.stack([h7, h8, h6], axis=-1)], axis=-2)                    # (B, 3, 3)
    return jax.vmap(jax.scipy.linalg.expm)(A)


def warp_grid_cm(xy_cm, warp_param):
    """xy_cm: (B, 2, HW) -> warped (B, 2, HW) via per-sample homography."""
    Hmat = sl3_to_SL3(warp_param)                                      # (B, 3, 3)
    ones = jnp.ones((xy_cm.shape[0], 1, xy_cm.shape[2]), xy_cm.dtype)
    xy_hom = jnp.concatenate([xy_cm, ones], axis=1)                    # (B, 3, HW)
    warped = jnp.einsum("bij,bjn->bin", Hmat, xy_hom)                  # (B, 3, HW)
    return warped[:, :2, :] / warped[:, 2:3, :]


def barf_mask(progress, max_progress, barf_c2f, L):
    start, end = barf_c2f
    alpha = (progress / max_progress - start) / (end - start) * L
    k = np.arange(L, dtype=np.float32)
    return (1.0 - np.cos(np.clip(alpha - k, 0.0, 1.0) * np.pi)) / 2.0


def neural_image_forward(v_img, params, warp_weight,
                         raw_h, raw_w, crop, num_sample,
                         progress=0, max_progress=5000, barf_c2f=(0.0, 0.4)):
    assert v_img.shape[1] == num_sample
    img = v_img[0]                                                     # (B, C, crop, crop)
    xy_cm = get_normalized_pixel_grid_crop_cm(raw_h, raw_w, crop, num_sample)
    xy_warped = warp_grid_cm(xy_cm, warp_weight)                       # (B, 2, HW)

    enc_w = barf_mask(progress, max_progress, barf_c2f, POS_L)
    w1f, wrest, bblob = prepare_kernel_params(params, enc_w)
    rgb_cm = run_mlp(xy_warped.astype(jnp.float32), w1f, wrest, bblob) # (B, 3, HW)
    rgb_map = rgb_cm.reshape(num_sample, 3, img.shape[2], img.shape[3])  # NCHW
    return rgb_map, warp_weight


# ------------------------- pure-JAX reference (f32) -----------------------

def reference_rgb_cm(xy_warped_cm, params, enc_w):
    w1, b1, w2, b2, w3, b3, w4, b4, w5, b5 = params
    xy = jnp.transpose(xy_warped_cm, (0, 2, 1))                        # (B, HW, 2)
    L = POS_L
    freq = (2.0 ** jnp.arange(L, dtype=jnp.float32)) * jnp.float32(np.pi)
    spec = xy[..., None] * freq                                        # (B, HW, 2, L)
    enc = jnp.stack([jnp.sin(spec), jnp.cos(spec)], axis=-2)           # (B, HW, 2, 2, L)
    enc = enc.reshape(xy.shape[0], xy.shape[1], -1)                    # (B, HW, 4L)
    enc = (enc.reshape(-1, L) * jnp.asarray(enc_w, jnp.float32)).reshape(enc.shape)
    feat = jnp.concatenate([xy, enc], axis=-1)                         # (B, HW, 34)
    h = feat
    for w, b in [(w1, b1), (w2, b2), (w3, b3), (w4, b4)]:
        h = jnp.maximum(h @ w + b, 0.0)
    rgb = jax.nn.sigmoid(h @ w5 + b5)                                  # (B, HW, 3)
    return jnp.transpose(rgb, (0, 2, 1))                               # (B, 3, HW)


# ----------------------- deterministic param init ------------------------

def init_params(key):
    dims = [(IN_DIM, HIDDEN), (HIDDEN, HIDDEN), (HIDDEN, HIDDEN),
            (HIDDEN, HIDDEN), (HIDDEN, 3)]
    params = []
    for i, (din, dout) in enumerate(dims):
        key, kw, kb = jax.random.split(key, 3)
        bound = 1.0 / np.sqrt(din)
        w = jax.random.uniform(kw, (din, dout), jnp.float32, -bound, bound)
        b = jax.random.uniform(kb, (1, dout), jnp.float32, -bound, bound)
        if i == 0:
            scale = np.sqrt(IN_DIM / 2.0)   # replicates mlp[0].weight/bias *= scale
            w = w * scale
            b = b * scale
        params += [w, b]
    return params


if __name__ == "__main__":
    raw_h, raw_w, crop, num_sample = 32, 32, 16, 2
    key = jax.random.PRNGKey(0)
    k_img, k_param = jax.random.split(key)

    # v_img: [1, num_sample, 3, crop, crop] (only its shape is used in forward)
    v_img = jax.random.uniform(k_img, (1, num_sample, 3, crop, crop), jnp.float32)
    params = init_params(k_param)
    warp_weight = jnp.zeros((num_sample, 8), jnp.float32)   # nn.Embedding init zeros_

    progress = 1000                                          # non-trivial BARF mask
    rgb_map, wp = neural_image_forward(v_img, params, warp_weight,
                                       raw_h, raw_w, crop, num_sample,
                                       progress=progress)
    rgb_map = jax.block_until_ready(rgb_map)
    assert rgb_map.shape == (num_sample, 3, crop, crop)
    assert wp.shape == (num_sample, 8)
    assert bool(jnp.all(jnp.isfinite(rgb_map)))

    # Cross-check against a pure-JAX f32 reference (bf16 MXU operands => loose tol).
    xy_cm = get_normalized_pixel_grid_crop_cm(raw_h, raw_w, crop, num_sample)
    xy_warped = warp_grid_cm(xy_cm, warp_weight)
    enc_w = barf_mask(progress, 5000, (0.0, 0.4), POS_L)
    ref = reference_rgb_cm(xy_warped, params, enc_w).reshape(num_sample, 3, crop, crop)
    err = float(jnp.max(jnp.abs(rgb_map - ref)))
    assert err < 5e-2, f"mismatch vs reference: {err}"

    print("KERNEL_OK")
</pallas_src>

<mosaic_0001>
module attributes {stable_mosaic.version = 11 : i64} {
  func.func @mlp_kernel(%arg0: i32, %arg1: i32, %arg2: memref<1x2x256xf32, #tpu.memory_space<vmem>>, %arg3: memref<32x40xbf16, #tpu.memory_space<vmem>>, %arg4: memref<4x32x32xbf16, #tpu.memory_space<vmem>>, %arg5: memref<5x32x1xf32, #tpu.memory_space<vmem>>, %arg6: memref<1x3x256xf32, #tpu.memory_space<vmem>>) attributes {dimension_semantics = [#tpu.dimension_semantics<parallel>, #tpu.dimension_semantics<parallel>], iteration_bounds = array<i64: 2, 1>, scalar_prefetch = 0 : i64, scratch_operands = 0 : i64, tpu.core_type = #tpu.core_type<tc>, window_params = [{transform_indices = @transform_0, window_bounds = array<i64: 1, 2, 256>}, {pipeline_mode = #tpu.pipeline_mode<synchronous>, transform_indices = @transform_1, window_bounds = array<i64: 32, 40>}, {pipeline_mode = #tpu.pipeline_mode<synchronous>, transform_indices = @transform_2, window_bounds = array<i64: 4, 32, 32>}, {pipeline_mode = #tpu.pipeline_mode<synchronous>, transform_indices = @transform_3, window_bounds = array<i64: 5, 32, 1>}, {transform_indices = @transform_4, window_bounds = array<i64: 1, 3, 256>}]} {
    %c0 = arith.constant 0 : index
    %c0_0 = arith.constant 0 : index
    %c0_1 = arith.constant 0 : index
    %0 = vector.load %arg2[%c0, %c0_0, %c0_1] : memref<1x2x256xf32, #tpu.memory_space<vmem>>, vector<1x2x256xf32>
    %1 = vector.shape_cast %0 : vector<1x2x256xf32> to vector<2x256xf32>
    %cst = arith.constant 2.000000e+00 : f32
    %2 = vector.broadcast %cst : f32 to vector<2x256xf32>
    %3 = arith.mulf %2, %1 : vector<2x256xf32>
    %cst_2 = arith.constant 4.000000e+00 : f32
    %4 = vector.broadcast %cst_2 : f32 to vector<2x256xf32>
    %5 = arith.mulf %4, %1 : vector<2x256xf32>
    %cst_3 = arith.constant 8.000000e+00 : f32
    %6 = vector.broadcast %cst_3 : f32 to vector<2x256xf32>
    %7 = arith.mulf %6, %1 : vector<2x256xf32>
    %8 = tpu.concatenate %1, %3, %5, %7 in 0 : vector<2x256xf32>, vector<2x256xf32>, vector<2x256xf32>, vector<2x256xf32> -> vector<8x256xf32>
    %cst_4 = arith.constant 3.14159274 : f32
    %9 = vector.broadcast %cst_4 : f32 to vector<8x256xf32>
    %10 = arith.mulf %8, %9 : vector<8x256xf32>
    %11 = math.sin %10 : vector<8x256xf32>
    %12 = math.cos %10 : vector<8x256xf32>
    %cst_5 = arith.constant 2.000000e+00 : f32
    %13 = vector.broadcast %cst_5 : f32 to vector<8x256xf32>
    %14 = arith.mulf %13, %11 : vector<8x256xf32>
    %15 = arith.mulf %14, %12 : vector<8x256xf32>
    %cst_6 = arith.constant 2.000000e+00 : f32
    %16 = vector.broadcast %cst_6 : f32 to vector<8x256xf32>
    %17 = arith.mulf %16, %11 : vector<8x256xf32>
    %18 = arith.mulf %17, %11 : vector<8x256xf32>
    %cst_7 = arith.constant 1.000000e+00 : f32
    %19 = vector.broadcast %cst_7 : f32 to vector<8x256xf32>
    %20 = arith.subf %19, %18 : vector<8x256xf32>
    %cst_8 = arith.constant 2.000000e+00 : f32
    %21 = vector.broadcast %cst_8 : f32 to vector<8x256xf32>
    %22 = arith.mulf %21, %15 : vector<8x256xf32>
    %23 = arith.mulf %22, %20 : vector<8x256xf32>
    %cst_9 = arith.constant 2.000000e+00 : f32
    %24 = vector.broadcast %cst_9 : f32 to vector<8x256xf32>
    %25 = arith.mulf %24, %15 : vector<8x256xf32>
    %26 = arith.mulf %25, %15 : vector<8x256xf32>
    %cst_10 = arith.constant 1.000000e+00 : f32
    %27 = vector.broadcast %cst_10 : f32 to vector<8x256xf32>
    %28 = arith.subf %27, %26 : vector<8x256xf32>
    %cst_11 = arith.constant 2.000000e+00 : f32
    %29 = vector.broadcast %cst_11 : f32 to vector<8x256xf32>
    %30 = arith.mulf %29, %23 : vector<8x256xf32>
    %31 = arith.mulf %30, %28 : vector<8x256xf32>
    %cst_12 = arith.constant 2.000000e+00 : f32
    %32 = vector.broadcast %cst_12 : f32 to vector<8x256xf32>
    %33 = arith.mulf %32, %23 : vector<8x256xf32>
    %34 = arith.mulf %33, %23 : vector<8x256xf32>
    %cst_13 = arith.constant 1.000000e+00 : f32
    %35 = vector.broadcast %cst_13 : f32 to vector<8x256xf32>
    %36 = arith.subf %35, %34 : vector<8x256xf32>
    %cst_14 = arith.constant 2.000000e+00 : f32
    %37 = vector.broadcast %cst_14 : f32 to vector<8x256xf32>
    %38 = arith.mulf %37, %31 : vector<8x256xf32>
    %39 = arith.mulf %38, %36 : vector<8x256xf32>
    %cst_15 = arith.constant 2.000000e+00 : f32
    %40 = vector.broadcast %cst_15 : f32 to vector<8x256xf32>
    %41 = arith.mulf %40, %31 : vector<8x256xf32>
    %42 = arith.mulf %41, %31 : vector<8x256xf32>
    %cst_16 = arith.constant 1.000000e+00 : f32
    %43 = vector.broadcast %cst_16 : f32 to vector<8x256xf32>
    %44 = arith.subf %43, %42 : vector<8x256xf32>
    %cst_17 = arith.constant 0.000000e+00 : f32
    %45 = vector.broadcast %cst_17 : f32 to vector<6x256xf32>
    %46 = tpu.concatenate %1, %45, %11, %39, %12, %44 in 0 : vector<2x256xf32>, vector<6x256xf32>, vector<8x256xf32>, vector<8x256xf32>, vector<8x256xf32>, vector<8x256xf32> -> vector<40x256xf32>
    %47 = arith.truncf %46 : vector<40x256xf32> to vector<40x256xbf16>
    %c0_18 = arith.constant 0 : index
    %c0_19 = arith.constant 0 : index
    %48 = vector.load %arg3[%c0_18, %c0_19] : memref<32x40xbf16, #tpu.memory_space<vmem>>, vector<32x40xbf16>
    %cst_20 = arith.constant dense<0.000000e+00> : vector<32x256xf32>
    %49 = tpu.matmul %48, %47, %cst_20 {dimension_numbers = #tpu.dot_dimension_numbers<[1], [0], [0], [1], [0, 0, 1, 1], [], []>} : vector<32x40xbf16>, vector<40x256xbf16>, vector<32x256xf32> -> vector<32x256xf32>
    %c0_21 = arith.constant 0 : index
    %c0_22 = arith.constant 0 : index
    %c0_23 = arith.constant 0 : index
    %50 = vector.load %arg5[%c0_21, %c0_22, %c0_23] : memref<5x32x1xf32, #tpu.memory_space<vmem>>, vector<1x32x1xf32>
    %51 = vector.shape_cast %50 : vector<1x32x1xf32> to vector<32x1xf32>
    %52 = vector.broadcast %51 : vector<32x1xf32> to vector<32x256xf32>
    %53 = arith.addf %49, %52 : vector<32x256xf32>
    %cst_24 = arith.constant 0.000000e+00 : f32
    %54 = vector.broadcast %cst_24 : f32 to vector<32x256xf32>
    %55 = arith.maximumf %53, %54 : vector<32x256xf32>
    %c0_25 = arith.constant 0 : index
    %c0_26 = arith.constant 0 : index
    %c0_27 = arith.constant 0 : index
    %56 = vector.load %arg4[%c0_25, %c0_26, %c0_27] : memref<4x32x32xbf16, #tpu.memory_space<vmem>>, vector<1x32x32xbf16>
    %57 = vector.shape_cast %56 : vector<1x32x32xbf16> to vector<32x32xbf16>
    %58 = arith.truncf %55 : vector<32x256xf32> to vector<32x256xbf16>
    %cst_28 = arith.constant dense<0.000000e+00> : vector<32x256xf32>
    %59 = tpu.matmul %57, %58, %cst_28 {dimension_numbers = #tpu.dot_dimension_numbers<[1], [0], [0], [1], [0, 0, 1, 1], [], []>} : vector<32x32xbf16>, vector<32x256xbf16>, vector<32x256xf32> -> vector<32x256xf32>
    %c1 = arith.constant 1 : index
    %c0_29 = arith.constant 0 : index
    %c0_30 = arith.constant 0 : index
    %60 = vector.load %arg5[%c1, %c0_29, %c0_30] : memref<5x32x1xf32, #tpu.memory_space<vmem>>, vector<1x32x1xf32>
    %61 = vector.shape_cast %60 : vector<1x32x1xf32> to vector<32x1xf32>
    %62 = vector.broadcast %61 : vector<32x1xf32> to vector<32x256xf32>
    %63 = arith.addf %59, %62 : vector<32x256xf32>
    %cst_31 = arith.constant 0.000000e+00 : f32
    %64 = vector.broadcast %cst_31 : f32 to vector<32x256xf32>
    %65 = arith.maximumf %63, %64 : vector<32x256xf32>
    %c1_32 = arith.constant 1 : index
    %c0_33 = arith.constant 0 : index
    %c0_34 = arith.constant 0 : index
    %66 = vector.load %arg4[%c1_32, %c0_33, %c0_34] : memref<4x32x32xbf16, #tpu.memory_space<vmem>>, vector<1x32x32xbf16>
    %67 = vector.shape_cast %66 : vector<1x32x32xbf16> to vector<32x32xbf16>
    %68 = arith.truncf %65 : vector<32x256xf32> to vector<32x256xbf16>
    %cst_35 = arith.constant dense<0.000000e+00> : vector<32x256xf32>
    %69 = tpu.matmul %67, %68, %cst_35 {dimension_numbers = #tpu.dot_dimension_numbers<[1], [0], [0], [1], [0, 0, 1, 1], [], []>} : vector<32x32xbf16>, vector<32x256xbf16>, vector<32x256xf32> -> vector<32x256xf32>
    %c2 = arith.constant 2 : index
    %c0_36 = arith.constant 0 : index
    %c0_37 = arith.constant 0 : index
    %70 = vector.load %arg5[%c2, %c0_36, %c0_37] : memref<5x32x1xf32, #tpu.memory_space<vmem>>, vector<1x32x1xf32>
    %71 = vector.shape_cast %70 : vector<1x32x1xf32> to vector<32x1xf32>
    %72 = vector.broadcast %71 : vector<32x1xf32> to vector<32x256xf32>
    %73 = arith.addf %69, %72 : vector<32x256xf32>
    %cst_38 = arith.constant 0.000000e+00 : f32
    %74 = vector.broadcast %cst_38 : f32 to vector<32x256xf32>
    %75 = arith.maximumf %73, %74 : vector<32x256xf32>
    %c2_39 = arith.constant 2 : index
    %c0_40 = arith.constant 0 : index
    %c0_41 = arith.constant 0 : index
    %76 = vector.load %arg4[%c2_39, %c0_40, %c0_41] : memref<4x32x32xbf16, #tpu.memory_space<vmem>>, vector<1x32x32xbf16>
    %77 = vector.shape_cast %76 : vector<1x32x32xbf16> to vector<32x32xbf16>
    %78 = arith.truncf %75 : vector<32x256xf32> to vector<32x256xbf16>
    %cst_42 = arith.constant dense<0.000000e+00> : vector<32x256xf32>
    %79 = tpu.matmul %77, %78, %cst_42 {dimension_numbers = #tpu.dot_dimension_numbers<[1], [0], [0], [1], [0, 0, 1, 1], [], []>} : vector<32x32xbf16>, vector<32x256xbf16>, vector<32x256xf32> -> vector<32x256xf32>
    %c3 = arith.constant 3 : index
    %c0_43 = arith.constant 0 : index
    %c0_44 = arith.constant 0 : index
    %80 = vector.load %arg5[%c3, %c0_43, %c0_44] : memref<5x32x1xf32, #tpu.memory_space<vmem>>, vector<1x32x1xf32>
    %81 = vector.shape_cast %80 : vector<1x32x1xf32> to vector<32x1xf32>
    %82 = vector.broadcast %81 : vector<32x1xf32> to vector<32x256xf32>
    %83 = arith.addf %79, %82 : vector<32x256xf32>
    %cst_45 = arith.constant 0.000000e+00 : f32
    %84 = vector.broadcast %cst_45 : f32 to vector<32x256xf32>
    %85 = arith.maximumf %83, %84 : vector<32x256xf32>
    %c3_46 = arith.constant 3 : index
    %c0_47 = arith.constant 0 : index
    %c0_48 = arith.constant 0 : index
    %86 = vector.load %arg4[%c3_46, %c0_47, %c0_48] : memref<4x32x32xbf16, #tpu.memory_space<vmem>>, vector<1x32x32xbf16>
    %87 = vector.shape_cast %86 : vector<1x32x32xbf16> to vector<32x32xbf16>
    %88 = arith.truncf %85 : vector<32x256xf32> to vector<32x256xbf16>
    %cst_49 = arith.constant dense<0.000000e+00> : vector<32x256xf32>
    %89 = tpu.matmul %87, %88, %cst_49 {dimension_numbers = #tpu.dot_dimension_numbers<[1], [0], [0], [1], [0, 0, 1, 1], [], []>} : vector<32x32xbf16>, vector<32x256xbf16>, vector<32x256xf32> -> vector<32x256xf32>
    %c4 = arith.constant 4 : index
    %c0_50 = arith.constant 0 : index
    %c0_51 = arith.constant 0 : index
    %90 = vector.load %arg5[%c4, %c0_50, %c0_51] : memref<5x32x1xf32, #tpu.memory_space<vmem>>, vector<1x32x1xf32>
    %91 = vector.shape_cast %90 : vector<1x32x1xf32> to vector<32x1xf32>
    %92 = vector.broadcast %91 : vector<32x1xf32> to vector<32x256xf32>
    %93 = arith.addf %89, %92 : vector<32x256xf32>
    %94 = vector.extract_strided_slice %93 {offsets = [0, 0], sizes = [3, 256], strides = [1, 1]} : vector<32x256xf32> to vector<3x256xf32>
    %95 = arith.negf %94 : vector<3x256xf32>
    %96 = math.exp %95 : vector<3x256xf32>
    %cst_52 = arith.constant 1.000000e+00 : f32
    %97 = vector.broadcast %cst_52 : f32 to vector<3x256xf32>
    %98 = arith.addf %97, %96 : vector<3x256xf32>
    %99 = arith.divf %97, %98 : vector<3x256xf32>
    %c0_53 = arith.constant 0 : index
    %c0_54 = arith.constant 0 : index
    %c0_55 = arith.constant 0 : index
    %100 = vector.load %arg6[%c0_53, %c0_54, %c0_55] : memref<1x3x256xf32, #tpu.memory_space<vmem>>, vector<1x3x256xf32>
    %101 = vector.shape_cast %100 : vector<1x3x256xf32> to vector<3x256xf32>
    %102 = vector.shape_cast %99 : vector<3x256xf32> to vector<1x3x256xf32>
    tpu.vector_store %arg6[%c0_53, %c0_54, %c0_55], %102 {strides = array<i32>} : memref<1x3x256xf32, #tpu.memory_space<vmem>>, vector<1x3x256xf32>,
    return
  }
  func.func @transform_0(%arg0: i32, %arg1: i32) -> (i32, i32, i32) {
    %c0_i32 = arith.constant 0 : i32
    %c0_i32_0 = arith.constant 0 : i32
    return %arg0, %c0_i32, %arg1 : i32, i32, i32
  }
  func.func @transform_1(%arg0: i32, %arg1: i32) -> (i32, i32) {
    %c0_i32 = arith.constant 0 : i32
    %c0_i32_0 = arith.constant 0 : i32
    %c0_i32_1 = arith.constant 0 : i32
    return %c0_i32, %c0_i32_0 : i32, i32
  }
  func.func @transform_2(%arg0: i32, %arg1: i32) -> (i32, i32, i32) {
    %c0_i32 = arith.constant 0 : i32
    %c0_i32_0 = arith.constant 0 : i32
    %c0_i32_1 = arith.constant 0 : i32
    %c0_i32_2 = arith.constant 0 : i32
    return %c0_i32, %c0_i32_0, %c0_i32_1 : i32, i32, i32
  }
  func.func @transform_3(%arg0: i32, %arg1: i32) -> (i32, i32, i32) {
    %c0_i32 = arith.constant 0 : i32
    %c0_i32_0 = arith.constant 0 : i32
    %c0_i32_1 = arith.constant 0 : i32
    %c0_i32_2 = arith.constant 0 : i32
    return %c0_i32, %c0_i32_0, %c0_i32_1 : i32, i32, i32
  }
  func.func @transform_4(%arg0: i32, %arg1: i32) -> (i32, i32, i32) {
    %c0_i32 = arith.constant 0 : i32
    %c0_i32_0 = arith.constant 0 : i32
    return %arg0, %c0_i32, %arg1 : i32, i32, i32
  }
}

</mosaic_0001>

<llo_original>
// kernel: tpu_custom_call.1
$region0: #{tpu_custom_call.1}
  #allocation0 [shape = 'u32[]', space=smem, size = 0x4, offset = 0x4, fixed_abs, tag = 'smem constant byte address 0x4 - core index']
  #allocation1 [shape = 'u32[72,128]{1,0:T(1,128)}', space=vmem, size = 0x9000, scoped, tag = 'internal scratch']
  %s0 = inlined_call_operand.vmem [shape: f32[2,2,256], index: 0, kind: input, shape index: {}]
  %s1 = inlined_call_operand.vmem [shape: bf16[32,40], index: 1, kind: input, shape index: {}]
  %s2 = inlined_call_operand.vmem [shape: bf16[4,32,32], index: 2, kind: input, shape index: {}]
  %s3 = inlined_call_operand.vmem [shape: f32[5,32,1], index: 3, kind: input, shape index: {}]
  %s4 = inlined_call_operand.vmem [shape: f32[2,3,256], index: 4, kind: output, shape index: {}]
  %s5 = sld [smem:[#allocation0]]
  $region49: #{tpu_custom_call.1} parent=0
    _
  %s7 = ssub.s32 1, %s5
  %s8 = scalar_select 0, %s7, %s5
  loop: start=0, step=1, limit=4
  $region2: #{tpu_custom_call.1} parent=0 // loop_pre_header
    _
  $region3: #{tpu_custom_call.1} parent=0 // loop_header
    %s10 = sphi 0, %s14
    %p11 = scmp.ge.s32.totalorder %s10, 4
    %s17 = sphi 0, %s29
    %s18 = sphi 0, %s25
    %s19 = sphi 0, %s17
    %s20 = sphi 0, %s18
    %s21 = sphi 0, %s19
    %s22 = sphi 0, %s20
    %s34 = sphi 0, %s36
    %s37 = sphi 0, %s34
    %s38 = sphi 0, %s37
    %s54 = sphi 0, %s38
    %s58 = sphi 0, %s58
    %s60 = sphi 0, %s58
    %s61 = sphi 0, %s60
    %s75 = sphi 0, %s61
    %s79 = sphi 0, %s79
    %s81 = sphi 0, %s79
    %s82 = sphi 0, %s81
    %s96 = sphi 0, %s82
    %s100 = sphi 0, %s100
    %s102 = sphi 0, %s100
    %s103 = sphi 0, %s102
    %s117 = sphi 0, %s103
    %s125 = sphi 0, %s127
    %s128 = sphi 0, %s125
    %s129 = sphi 0, %s128
    %s145 = sphi 0, %s129
  $region4: #{tpu_custom_call.1} parent=0 // loop_header_branch
    %13 = sbr.rel (%p11) target = $region8
  $region5: #{tpu_custom_call.1} parent=0 // loop_body
    %s15 = ssub.s32 %s10, 1
    %s16 = ssub.s32 %s10, 2
    %s23 = sadd.s32 1, %s18
    %p24 = scmp.ge.s32.totalorder %s23, 1
    %s25 = scalar_select %p24, 0, %s23
    %s26 = sadd.s32 1, %s17
    %s27 = scalar_select %p24, %s26, %s17
    %p28 = scmp.ge.s32.totalorder %s27, 2
    %s29 = scalar_select %p28, 0, %s27
    %s30 = ssub.s32 %s17, %s29
    %s31 = ssub.s32 %s18, %s25
    %s32 = sor.u32 %s30, %s31
    %p33 = scmp.eq.s32.totalorder %s32, 0
    %s35 = sadd.s32 %s34, 1
    %s36 = scalar_select %p33, %s34, %s35
    %p39 = pneg %p33
    %p40 = scmp.eq.s32.totalorder %s10, 1
    %p41 = por %p39, %p40
    %p42 = scmp.ne.s32.totalorder %s34, %s37
    %p43 = scmp.eq.s32.totalorder %s10, 0
    %p44 = por %p42, %p43
    %p45 = scmp.ne.s32.totalorder %s34, %s37
    %p46 = scmp.eq.s32.totalorder %s15, 1
    %p47 = por %p45, %p46
    %p48 = scmp.ne.s32.totalorder %s37, %s38
    %p49 = scmp.eq.s32.totalorder %s15, 0
    %p50 = por %p48, %p49
    %p51 = scmp.ne.s32.totalorder %s37, %s38
    %p52 = scmp.eq.s32.totalorder %s16, 1
    %p53 = por %p51, %p52
    %p55 = scmp.ne.s32.totalorder %s38, %s54
    %p56 = scmp.eq.s32.totalorder %s16, 0
    %p57 = por %p55, %p56
    %s59 = sadd.s32 %s58, 1
    %p62 = scmp.eq.s32.totalorder %s10, 1
    %p63 = scmp.ne.s32.totalorder %s58, %s60
    %p64 = scmp.eq.s32.totalorder %s10, 0
    %p65 = por %p63, %p64
    %p66 = scmp.ne.s32.totalorder %s58, %s60
    %p67 = scmp.eq.s32.totalorder %s15, 1
    %p68 = por %p66, %p67
    %p69 = scmp.ne.s32.totalorder %s60, %s61
    %p70 = scmp.eq.s32.totalorder %s15, 0
    %p71 = por %p69, %p70
    %p72 = scmp.ne.s32.totalorder %s60, %s61
    %p73 = scmp.eq.s32.totalorder %s16, 1
    %p74 = por %p72, %p73
    %p76 = scmp.ne.s32.totalorder %s61, %s75
    %p77 = scmp.eq.s32.totalorder %s16, 0
    %p78 = por %p76, %p77
    %s80 = sadd.s32 %s79, 1
    %p83 = scmp.eq.s32.totalorder %s10, 1
    %p84 = scmp.ne.s32.totalorder %s79, %s81
    %p85 = scmp.eq.s32.totalorder %s10, 0
    %p86 = por %p84, %p85
    %p87 = scmp.ne.s32.totalorder %s79, %s81
    %p88 = scmp.eq.s32.totalorder %s15, 1
    %p89 = por %p87, %p88
    %p90 = scmp.ne.s32.totalorder %s81, %s82
    %p91 = scmp.eq.s32.totalorder %s15, 0
    %p92 = por %p90, %p91
    %p93 = scmp.ne.s32.totalorder %s81, %s82
    %p94 = scmp.eq.s32.totalorder %s16, 1
    %p95 = por %p93, %p94
    %p97 = scmp.ne.s32.totalorder %s82, %s96
    %p98 = scmp.eq.s32.totalorder %s16, 0
    %p99 = por %p97, %p98
    %s101 = sadd.s32 %s100, 1
    %p104 = scmp.eq.s32.totalorder %s10, 1
    %p105 = scmp.ne.s32.totalorder %s100, %s102
    %p106 = scmp.eq.s32.totalorder %s10, 0
    %p107 = por %p105, %p106
    %p108 = scmp.ne.s32.totalorder %s100, %s102
    %p109 = scmp.eq.s32.totalorder %s15, 1
    %p110 = por %p108, %p109
    %p111 = scmp.ne.s32.totalorder %s102, %s103
    %p112 = scmp.eq.s32.totalorder %s15, 0
    %p113 = por %p111, %p112
    %p114 = scmp.ne.s32.totalorder %s102, %s103
    %p115 = scmp.eq.s32.totalorder %s16, 1
    %p116 = por %p114, %p115
    %p118 = scmp.ne.s32.totalorder %s103, %s117
    %p119 = scmp.eq.s32.totalorder %s16, 0
    %p120 = por %p118, %p119
    %s121 = ssub.s32 %s17, %s29
    %s122 = ssub.s32 %s18, %s25
    %s123 = sor.u32 %s121, %s122
    %p124 = scmp.eq.s32.totalorder %s123, 0
    %s126 = sadd.s32 %s125, 1
    %s127 = scalar_select %p124, %s125, %s126
    %p130 = pneg %p124
    %p131 = scmp.eq.s32.totalorder %s10, 1
    %p132 = por %p130, %p131
    %p133 = scmp.ne.s32.totalorder %s125, %s128
    %p134 = scmp.eq.s32.totalorder %s10, 0
    %p135 = por %p133, %p134
    %p136 = scmp.ne.s32.totalorder %s125, %s128
    %p137 = scmp.eq.s32.totalorder %s15, 1
    %p138 = por %p136, %p137
    %p139 = scmp.ne.s32.totalorder %s128, %s129
    %p140 = scmp.eq.s32.totalorder %s15, 0
    %p141 = por %p139, %p140
    %p142 = scmp.ne.s32.totalorder %s128, %s129
    %p143 = scmp.eq.s32.totalorder %s16, 1
    %p144 = por %p142, %p143
    %p146 = scmp.ne.s32.totalorder %s129, %s145
    %p147 = scmp.eq.s32.totalorder %s16, 0
    %p148 = por %p146, %p147
    %p149 = scmp.le.s32.totalorder 1, %s10
    %p150 = scmp.lt.s32.totalorder %s10, 3
    %p151 = pnand %p149, %p150
    %p152 = pneg %p151
    // Predicated region
    $region9: #{tpu_custom_call.1} parent=5 // pred_check
      _
    $region10: #{tpu_custom_call.1} parent=5 // pred_check_branch
      %154 = sbr.rel (%p151) target = $region12
    $region11: #{tpu_custom_call.1} parent=5 // pred_region
      %s155 = ssub.s32 %s10, 1
      // Predicated region
      $region13: #{tpu_custom_call.1} parent=11 // pred_check
        %p156 = pneg %p71
      $region14: #{tpu_custom_call.1} parent=11 // pred_check_branch
        %158 = sbr.rel (%p156) target = $region16
      $region15: #{tpu_custom_call.1} parent=11 // pred_region
        _
      $region16: #{tpu_custom_call.1} parent=11 // pred_fallthru
        _
      // Predicated region
      $region17: #{tpu_custom_call.1} parent=11 // pred_check
        %p159 = pneg %p92
      $region18: #{tpu_custom_call.1} parent=11 // pred_check_branch
        %161 = sbr.rel (%p159) target = $region20
      $region19: #{tpu_custom_call.1} parent=11 // pred_region
        _
      $region20: #{tpu_custom_call.1} parent=11 // pred_fallthru
        _
      // Predicated region
      $region21: #{tpu_custom_call.1} parent=11 // pred_check
        %p162 = pneg %p113
      $region22: #{tpu_custom_call.1} parent=11 // pred_check_branch
        %164 = sbr.rel (%p162) target = $region24
      $region23: #{tpu_custom_call.1} parent=11 // pred_region
        _
      $region24: #{tpu_custom_call.1} parent=11 // pred_fallthru
        _
    $region12: #{tpu_custom_call.1} parent=5 // pred_fallthru
      _
    %p165 = scmp.lt.s32.totalorder %s10, 2
    // Predicated region
    $region25: #{tpu_custom_call.1} parent=5 // pred_check
      %p166 = pneg %p165
    $region26: #{tpu_custom_call.1} parent=5 // pred_check_branch
      %168 = sbr.rel (%p166) target = $region28
    $region27: #{tpu_custom_call.1} parent=5 // pred_region
      // Predicated region
      $region29: #{tpu_custom_call.1} parent=27 // pred_check
        %p169 = pneg %p44
      $region30: #{tpu_custom_call.1} parent=27 // pred_check_branch
        %171 = sbr.rel (%p169) target = $region32
      $region31: #{tpu_custom_call.1} parent=27 // pred_region
        %s172 = smul.u32 2, %s18
        %p173 = scmp.lt.s32.totalorder %s17, 1
        %s174 = scalar_select %p173, %s17, 1
        %p175 = scmp.lt.s32.totalorder %s172, 1
        %s176 = scalar_select %p175, %s172, 1
        %s177 = smul.addr %s174, 2
        %s178 = sadd.s32 %s176, %s177
        %s179 = smul.addr %s178, 2
        %s180 = scalar_lea.vmem %s0, %s179
        %s181 = smul.u32 2, %s18
      $region32: #{tpu_custom_call.1} parent=27 // pred_fallthru
        _
    $region28: #{tpu_custom_call.1} parent=5 // pred_fallthru
      _
    %p182 = scmp.le.s32.totalorder 1, %s10
    %p183 = scmp.lt.s32.totalorder %s10, 3
    %p184 = pnand %p182, %p183
    %p185 = pneg %p184
    // Predicated region
    $region33: #{tpu_custom_call.1} parent=5 // pred_check
      _
    $region34: #{tpu_custom_call.1} parent=5 // pred_check_branch
      %187 = sbr.rel (%p184) target = $region36
    $region35: #{tpu_custom_call.1} parent=5 // pred_region
      %s188 = ssub.s32 %s10, 1
      %s189 = smul.u32 2, %s20
      %p190 = scmp.lt.s32.totalorder %s19, 1
      %s191 = scalar_select %p190, %s19, 1
      %p192 = scmp.lt.s32.totalorder %s189, 1
      %s193 = scalar_select %p192, %s189, 1
      %s194 = smul.addr %s191, 2
      %s195 = sadd.s32 %s193, %s194
      %s196 = smul.addr %s195, 2
      %s197 = scalar_lea.vmem %s0, %s196
      %p198 = pneg %p50
      %p199 = pneg %p47
      %p200 = pneg %p71
      %p201 = pneg %p68
      %p202 = pneg %p92
      %p203 = pneg %p89
      %p204 = pneg %p113
      %p205 = pneg %p110
      %p206 = pneg %p141
      %p207 = pneg %p138
      %s208 = smul.u32 2, %s20
      %p209 = scmp.lt.s32.totalorder %s19, 1
      %s210 = scalar_select %p209, %s19, 1
      %p211 = scmp.lt.s32.totalorder %s208, 1
      %s212 = scalar_select %p211, %s208, 1
      %s213 = smul.addr %s210, 2
      %s214 = sadd.s32 %s212, %s213
      %s215 = smul.addr %s214, 4
      %s216 = scalar_lea.vmem %s4, %s215
      %s217 = smul.u32 2, %s20
      %p218 = scmp.lt.s32.totalorder %s19, 1
      %s219 = scalar_select %p218, %s19, 1
      %p220 = scmp.lt.s32.totalorder %s217, 1
      %s221 = scalar_select %p220, %s217, 1
      %s222 = smul.addr %s219, 2
      %s223 = sadd.s32 %s221, %s222
      %s224 = smul.addr %s223, 2
      %s225 = scalar_lea.vmem %s0, %s224
      %s226 = smul.u32 2, %s20
      %s227 = smul.u32 2, %s20
      %p228 = scmp.lt.s32.totalorder %s19, 1
      %s229 = scalar_select %p228, %s19, 1
      %p230 = scmp.lt.s32.totalorder %s227, 1
      %s231 = scalar_select %p230, %s227, 1
      %s232 = smul.addr %s229, 2
      %s233 = sadd.s32 %s231, %s232
      %s234 = smul.addr %s233, 4
      %s235 = scalar_lea.vmem %s4, %s234
      %s236 = smul.u32 2, %s20
      %v238 = vld [vmem:[%s225] sm:$0xf]
      %v239 = vmul.f32 %v238, 2.0
      %v240 = vmul.f32 %v238, 4.0
      %v241 = vmul.f32 %v238, 8.0
      %243 = vst [vmem:[#allocation1] ss:$4 sm:$0xff] %v238
      %v244 = vld.sshfl [vmem:[#allocation1] sm:$0xff pattern:$0x73625140]
      %v245 = vld.sshfl [vmem:[#allocation1 + $0x8] sm:$0xff pattern:$0x73625140]
      %s249 = scalar_lea.vmem [#allocation1], 1
      %250 = vst [vmem:[%s249] ss:$4 sm:$0xff] %v239
      %v251 = vld.sshfl [vmem:[#allocation1] sm:$0xff pattern:$0x73625140]
      %v252 = vld.sshfl [vmem:[#allocation1 + $0x8] sm:$0xff pattern:$0x73625140]
      %s256 = scalar_lea.vmem [#allocation1], 2
      %257 = vst [vmem:[%s256] ss:$4 sm:$0xff] %v240
      %v258 = vld.sshfl [vmem:[#allocation1] sm:$0xff pattern:$0x73625140]
      %v259 = vld.sshfl [vmem:[#allocation1 + $0x8] sm:$0xff pattern:$0x73625140]
      %s263 = scalar_lea.vmem [#allocation1], 3
      %264 = vst [vmem:[%s263] ss:$4 sm:$0xff] %v241
      %v265 = vld.sshfl [vmem:[#allocation1] sm:$0xff pattern:$0x73625140]
      %v266 = vld.sshfl [vmem:[#allocation1 + $0x8] sm:$0xff pattern:$0x73625140]
      %vm269 = vcmask 1041408
      %v270 = vsel %vm269, %v244, %v251
      %v271 = vsel %vm269, %v245, %v252
      %vm272 = vcmask 1043456
      %v273 = vsel %vm272, %v270, %v258
      %v274 = vsel %vm272, %v271, %v259
      %vm275 = vcmask 1045504
      %v276 = vsel %vm275, %v273, %v265
      %v277 = vsel %vm275, %v274, %v266
      %v278 = vmul.f32 %v276, 3.1415927
      %v279 = vmul.f32 %v277, 3.1415927
      %v280 = vand.u32 2147483647, %v278
      %vm281 = vcmp.le.f32.partialorder %v280, 0.7853982
      %vm282 = vcmp.lt.s32.totalorder %v278, 0
      %v283 = vand.u32 %v278, 2139095040
      %v284 = vshrl.u32 %v283, 23
      %v285 = vsub.s32 %v284, 127
      %v286 = vand.u32 2147483647, %v278
      %v287 = vand.u32 %v286, 8388607
      %v288 = vor.u32 %v287, 8388608
      %v289 = vsub.s32 0, %v288
      %v290 = vadd.s32 %v285, 1
      %vm291 = vcmp.gt.s32.totalorder %v290, 0
      %v292 = vsel %vm291, %v290, 0
      %v293 = vshrl.u32 %v292, 5
      %v294 = vand.u32 %v292, 31
      %v295 = vsub.s32 32, %v294
      %v296 = vshrl.u32 683565275, %v295
      %v297 = vshll.u32 683565275, %v294
      %v298 = vshrl.u32 2475754826, %v295
      %v299 = vor.u32 %v297, %v298
      %v300 = vshll.u32 2475754826, %v294
      %v301 = vshrl.u32 2131351028, %v295
      %v302 = vor.u32 %v300, %v301
      %v303 = vshll.u32 2131351028, %v294
      %v304 = vshrl.u32 2102212464, %v295
      %v305 = vor.u32 %v303, %v304
      %v306 = vshll.u32 2102212464, %v294
      %v307 = vshrl.u32 920167782, %v295
      %v308 = vor.u32 %v306, %v307
      %v309 = vshll.u32 920167782, %v294
      %v310 = vshrl.u32 1326507024, %v295
      %v311 = vor.u32 %v309, %v310
      %vm312 = vcmp.lt.s32.totalorder %v293, 1
      %vm313 = vcmp.lt.s32.totalorder %v293, 2
      %vm314 = vcmp.lt.s32.totalorder %v293, 3
      %vm315 = vcmp.lt.s32.totalorder %v293, 4
      %v316 = vsel %vm312, %v296, %v299
      %v317 = vsel %vm315, %v305, 2102212464
      %v318 = vsel %vm314, %v302, %v317
      %v319 = vsel %vm313, %v316, %v318
      %v320 = vsel %vm312, %v299, %v302
      %v321 = vsel %vm315, %v308, 920167782
      %v322 = vsel %vm314, %v305, %v321
      %v323 = vsel %vm313, %v320, %v322
      %v324 = vsel %vm312, %v302, %v305
      %v325 = vsel %vm315, %v311, 1326507024
      %v326 = vsel %vm314, %v308, %v325
      %v327 = vsel %vm313, %v324, %v326
      %v328 = vshll.u32 %v288, 8
      %v329 = vand.u32 %v328, 65535
      %v330 = vshrl.u32 %v328, 16
      %v331 = vand.u32 %v327, 65535
      %v332 = vshrl.u32 %v327, 16
      %v333 = vmul.u32 %v329, %v331
      %v334 = vmul.u32 %v329, %v332
      %v335 = vmul.u32 %v330, %v331
      %v336 = vmul.u32 %v330, %v332
      %v337 = vshll.u32 %v334, 16
      %v338 = vshrl.u32 %v334, 16
      %v339 = vshll.u32 %v335, 16
      %v340 = vshrl.u32 %v335, 16
      %vm341 = vc.u32 %v333, %v337
      %v342 = vsel %vm341, 1, 0
      %v343 = vadd.s32 %v333, %v337
      %v344 = vadd.s32 %v336, %v342
      %vm345 = vc.u32 %v343, %v339
      %v346 = vsel %vm345, 1, 0
      %v347 = vadd.s32 %v343, %v339
      %v348 = vadd.s32 %v344, %v346
      %v349 = vadd.s32 %v348, %v338
      %v350 = vadd.s32 %v349, %v340
      %v351 = vand.u32 %v328, 65535
      %v352 = vshrl.u32 %v328, 16
      %v353 = vand.u32 %v323, 65535
      %v354 = vshrl.u32 %v323, 16
      %v355 = vmul.u32 %v351, %v353
      %v356 = vmul.u32 %v351, %v354
      %v357 = vmul.u32 %v352, %v353
      %v358 = vmul.u32 %v352, %v354
      %v359 = vshll.u32 %v356, 16
      %v360 = vshrl.u32 %v356, 16
      %v361 = vshll.u32 %v357, 16
      %v362 = vshrl.u32 %v357, 16
      %vm363 = vc.u32 %v355, %v359
      %v364 = vsel %vm363, 1, 0
      %v365 = vadd.s32 %v355, %v359
      %v366 = vadd.s32 %v358, %v364
      %vm367 = vc.u32 %v365, %v361
      %v368 = vsel %vm367, 1, 0
      %v369 = vadd.s32 %v365, %v361
      %v370 = vadd.s32 %v366, %v368
      %v371 = vadd.s32 %v370, %v360
      %v372 = vadd.s32 %v371, %v362
      %v373 = vmul.u32 %v328, %v319
      %v374 = vadd.s32 %v350, %v369
      %vm375 = vc.u32 %v350, %v369
      %v376 = vadd.s32 %v372, 1
      %v377 = vsel %vm375, %v376, %v372
      %v378 = vadd.s32 %v373, %v377
      %v379 = vadd.s32 %v378, 536870912
      %v380 = vshrl.u32 %v379, 30
      %v381 = vshll.u32 %v380, 30
      %v382 = vsub.s32 %v378, %v381
      %vm383 = vcmp.lt.s32.totalorder %v382, 0
      %v384 = vsub.s32 0, %v382
      %v385 = vsel %vm383, %v384, %v382
      %v386 = vclz %v385
      %v387 = vsub.s32 %v386, 2
      %vm388 = vcmp.gt.s32.totalorder 0, %v387
      %v389 = vsel %vm388, 0, %v387
      %v390 = vsub.s32 32, %v389
      %v391 = vshll.u32 %v382, %v389
      %v392 = vshrl.u32 %v374, %v390
      %v393 = vor.u32 %v391, %v392
      %v394 = vsub.s32 4294967266, %v389
      %v395 = vadd.s32 %v394, 127
      %v396 = vshll.u32 %v395, 23
      %v397 = vor.u32 4788187, %v396
      %v398 = vand.u32 2147483647, %v397
      %v400 = vcvt.s32.f32 %v393
      %v401 = vmul.f32 %v400, %v398
      %v402 = vxor.u32 %v401, 2147483648
      %v403 = vsel %vm282, %v402, %v401
      %v404 = vsub.s32 4, %v380
      %v405 = vsel %vm282, %v404, %v380
      %v406 = vsel %vm281, %v278, %v403
      %v407 = vsel %vm281, 0, %v405
      %v408 = vmul.f32 %v406, %v406
      %v409 = vmul.f32 %v408, -0.001358992
      %v410 = vadd.f32 %v409, 0.041655596
      %v411 = vmul.f32 %v408, %v410
      %v412 = vadd.f32 %v411, -0.4999988
      %v413 = vmul.f32 %v408, %v412
      %v414 = vadd.f32 1.0, %v413
      %v415 = vmul.f32 %v406, %v406
      %v416 = vmul.f32 %v415, -0.00019511016
      %v417 = vadd.f32 %v416, 0.008332121
      %v418 = vmul.f32 %v415, %v417
      %v419 = vadd.f32 %v418, -0.16666654
      %v420 = vmul.f32 %v415, %v419
      %v421 = vadd.f32 %v420, 1.0
      %v422 = vmul.f32 %v421, %v406
      %vm423 = vweird.f32 %v278
      %v424 = vadd.s32 %v407, 3
      %v425 = vand.u32 %v424, 3
      %vm426 = vcmp.lt.s32.totalorder %v425, 2
      %vm427 = vcmp.eq.s32.totalorder %v425, 0
      %v428 = vxor.u32 %v422, 2147483648
      %v429 = vsel %vm427, %v414, %v428
      %vm430 = vcmp.eq.s32.totalorder %v425, 2
      %v431 = vxor.u32 %v414, 2147483648
      %v432 = vsel %vm430, %v431, %v422
      %v433 = vsel %vm426, %v429, %v432
      %v434 = vsel %vm423, nan, %v433
      %v435 = vand.u32 2147483647, %v279
      %vm436 = vcmp.le.f32.partialorder %v435, 0.7853982
      %vm437 = vcmp.lt.s32.totalorder %v279, 0
      %v438 = vand.u32 %v279, 2139095040
      %v439 = vshrl.u32 %v438, 23
      %v440 = vsub.s32 %v439, 127
      %v441 = vand.u32 2147483647, %v279
      %v442 = vand.u32 %v441, 8388607
      %v443 = vor.u32 %v442, 8388608
      %v444 = vsub.s32 0, %v443
      %v445 = vadd.s32 %v440, 1
      %vm446 = vcmp.gt.s32.totalorder %v445, 0
      %v447 = vsel %vm446, %v445, 0
      %v448 = vshrl.u32 %v447, 5
      %v449 = vand.u32 %v447, 31
      %v450 = vsub.s32 32, %v449
      %v451 = vshrl.u32 683565275, %v450
      %v452 = vshll.u32 683565275, %v449
      %v453 = vshrl.u32 2475754826, %v450
      %v454 = vor.u32 %v452, %v453
      %v455 = vshll.u32 2475754826, %v449
      %v456 = vshrl.u32 2131351028, %v450
      %v457 = vor.u32 %v455, %v456
      %v458 = vshll.u32 2131351028, %v449
      %v459 = vshrl.u32 2102212464, %v450
      %v460 = vor.u32 %v458, %v459
      %v461 = vshll.u32 2102212464, %v449
      %v462 = vshrl.u32 920167782, %v450
      %v463 = vor.u32 %v461, %v462
      %v464 = vshll.u32 920167782, %v449
      %v465 = vshrl.u32 1326507024, %v450
      %v466 = vor.u32 %v464, %v465
      %vm467 = vcmp.lt.s32.totalorder %v448, 1
      %vm468 = vcmp.lt.s32.totalorder %v448, 2
      %vm469 = vcmp.lt.s32.totalorder %v448, 3
      %vm470 = vcmp.lt.s32.totalorder %v448, 4
      %v471 = vsel %vm467, %v451, %v454
      %v472 = vsel %vm470, %v460, 2102212464
      %v473 = vsel %vm469, %v457, %v472
      %v474 = vsel %vm468, %v471, %v473
      %v475 = vsel %vm467, %v454, %v457
      %v476 = vsel %vm470, %v463, 920167782
      %v477 = vsel %vm469, %v460, %v476
      %v478 = vsel %vm468, %v475, %v477
      %v479 = vsel %vm467, %v457, %v460
      %v480 = vsel %vm470, %v466, 1326507024
      %v481 = vsel %vm469, %v463, %v480
      %v482 = vsel %vm468, %v479, %v481
      %v483 = vshll.u32 %v443, 8
      %v484 = vand.u32 %v483, 65535
      %v485 = vshrl.u32 %v483, 16
      %v486 = vand.u32 %v482, 65535
      %v487 = vshrl.u32 %v482, 16
      %v488 = vmul.u32 %v484, %v486
      %v489 = vmul.u32 %v484, %v487
      %v490 = vmul.u32 %v485, %v486
      %v491 = vmul.u32 %v485, %v487
      %v492 = vshll.u32 %v489, 16
      %v493 = vshrl.u32 %v489, 16
      %v494 = vshll.u32 %v490, 16
      %v495 = vshrl.u32 %v490, 16
      %vm496 = vc.u32 %v488, %v492
      %v497 = vsel %vm496, 1, 0
      %v498 = vadd.s32 %v488, %v492
      %v499 = vadd.s32 %v491, %v497
      %vm500 = vc.u32 %v498, %v494
      %v501 = vsel %vm500, 1, 0
      %v502 = vadd.s32 %v498, %v494
      %v503 = vadd.s32 %v499, %v501
      %v504 = vadd.s32 %v503, %v493
      %v505 = vadd.s32 %v504, %v495
      %v506 = vand.u32 %v483, 65535
      %v507 = vshrl.u32 %v483, 16
      %v508 = vand.u32 %v478, 65535
      %v509 = vshrl.u32 %v478, 16
      %v510 = vmul.u32 %v506, %v508
      %v511 = vmul.u32 %v506, %v509
      %v512 = vmul.u32 %v507, %v508
      %v513 = vmul.u32 %v507, %v509
      %v514 = vshll.u32 %v511, 16
      %v515 = vshrl.u32 %v511, 16
      %v516 = vshll.u32 %v512, 16
      %v517 = vshrl.u32 %v512, 16
      %vm518 = vc.u32 %v510, %v514
      %v519 = vsel %vm518, 1, 0
      %v520 = vadd.s32 %v510, %v514
      %v521 = vadd.s32 %v513, %v519
      %vm522 = vc.u32 %v520, %v516
      %v523 = vsel %vm522, 1, 0
      %v524 = vadd.s32 %v520, %v516
      %v525 = vadd.s32 %v521, %v523
      %v526 = vadd.s32 %v525, %v515
      %v527 = vadd.s32 %v526, %v517
      %v528 = vmul.u32 %v483, %v474
      %v529 = vadd.s32 %v505, %v524
      %vm530 = vc.u32 %v505, %v524
      %v531 = vadd.s32 %v527, 1
      %v532 = vsel %vm530, %v531, %v527
      %v533 = vadd.s32 %v528, %v532
      %v534 = vadd.s32 %v533, 536870912
      %v535 = vshrl.u32 %v534, 30
      %v536 = vshll.u32 %v535, 30
      %v537 = vsub.s32 %v533, %v536
      %vm538 = vcmp.lt.s32.totalorder %v537, 0
      %v539 = vsub.s32 0, %v537
      %v540 = vsel %vm538, %v539, %v537
      %v541 = vclz %v540
      %v542 = vsub.s32 %v541, 2
      %vm543 = vcmp.gt.s32.totalorder 0, %v542
      %v544 = vsel %vm543, 0, %v542
      %v545 = vsub.s32 32, %v544
      %v546 = vshll.u32 %v537, %v544
      %v547 = vshrl.u32 %v529, %v545
      %v548 = vor.u32 %v546, %v547
      %v549 = vsub.s32 4294967266, %v544
      %v550 = vadd.s32 %v549, 127
      %v551 = vshll.u32 %v550, 23
      %v552 = vor.u32 4788187, %v551
      %v553 = vand.u32 2147483647, %v552
      %v555 = vcvt.s32.f32 %v548
      %v556 = vmul.f32 %v555, %v553
      %v557 = vxor.u32 %v556, 2147483648
      %v558 = vsel %vm437, %v557, %v556
      %v559 = vsub.s32 4, %v535
      %v560 = vsel %vm437, %v559, %v535
      %v561 = vsel %vm436, %v279, %v558
      %v562 = vsel %vm436, 0, %v560
      %v563 = vmul.f32 %v561, %v561
      %v564 = vmul.f32 %v563, -0.001358992
      %v565 = vadd.f32 %v564, 0.041655596
      %v566 = vmul.f32 %v563, %v565
      %v567 = vadd.f32 %v566, -0.4999988
      %v568 = vmul.f32 %v563, %v567
      %v569 = vadd.f32 1.0, %v568
      %v570 = vmul.f32 %v561, %v561
      %v571 = vmul.f32 %v570, -0.00019511016
      %v572 = vadd.f32 %v571, 0.008332121
      %v573 = vmul.f32 %v570, %v572
      %v574 = vadd.f32 %v573, -0.16666654
      %v575 = vmul.f32 %v570, %v574
      %v576 = vadd.f32 %v575, 1.0
      %v577 = vmul.f32 %v576, %v561
      %vm578 = vweird.f32 %v279
      %v579 = vadd.s32 %v562, 3
      %v580 = vand.u32 %v579, 3
      %vm581 = vcmp.lt.s32.totalorder %v580, 2
      %vm582 = vcmp.eq.s32.totalorder %v580, 0
      %v583 = vxor.u32 %v577, 2147483648
      %v584 = vsel %vm582, %v569, %v583
      %vm585 = vcmp.eq.s32.totalorder %v580, 2
      %v586 = vxor.u32 %v569, 2147483648
      %v587 = vsel %vm585, %v586, %v577
      %v588 = vsel %vm581, %v584, %v587
      %v589 = vsel %vm578, nan, %v588
      %v590 = vand.u32 2147483647, %v278
      %vm591 = vcmp.le.f32.partialorder %v590, 0.7853982
      %vm592 = vcmp.lt.s32.totalorder %v278, 0
      %v593 = vand.u32 %v278, 2139095040
      %v594 = vshrl.u32 %v593, 23
      %v595 = vsub.s32 %v594, 127
      %v596 = vand.u32 2147483647, %v278
      %v597 = vand.u32 %v596, 8388607
      %v598 = vor.u32 %v597, 8388608
      %v599 = vsub.s32 0, %v598
      %v600 = vadd.s32 %v595, 1
      %vm601 = vcmp.gt.s32.totalorder %v600, 0
      %v602 = vsel %vm601, %v600, 0
      %v603 = vshrl.u32 %v602, 5
      %v604 = vand.u32 %v602, 31
      %v605 = vsub.s32 32, %v604
      %v606 = vshrl.u32 683565275, %v605
      %v607 = vshll.u32 683565275, %v604
      %v608 = vshrl.u32 2475754826, %v605
      %v609 = vor.u32 %v607, %v608
      %v610 = vshll.u32 2475754826, %v604
      %v611 = vshrl.u32 2131351028, %v605
      %v612 = vor.u32 %v610, %v611
      %v613 = vshll.u32 2131351028, %v604
      %v614 = vshrl.u32 2102212464, %v605
      %v615 = vor.u32 %v613, %v614
      %v616 = vshll.u32 2102212464, %v604
      %v617 = vshrl.u32 920167782, %v605
      %v618 = vor.u32 %v616, %v617
      %v619 = vshll.u32 920167782, %v604
      %v620 = vshrl.u32 1326507024, %v605
      %v621 = vor.u32 %v619, %v620
      %vm622 = vcmp.lt.s32.totalorder %v603, 1
      %vm623 = vcmp.lt.s32.totalorder %v603, 2
      %vm624 = vcmp.lt.s32.totalorder %v603, 3
      %vm625 = vcmp.lt.s32.totalorder %v603, 4
      %v626 = vsel %vm622, %v606, %v609
      %v627 = vsel %vm625, %v615, 2102212464
      %v628 = vsel %vm624, %v612, %v627
      %v629 = vsel %vm623, %v626, %v628
      %v630 = vsel %vm622, %v609, %v612
      %v631 = vsel %vm625, %v618, 920167782
      %v632 = vsel %vm624, %v615, %v631
      %v633 = vsel %vm623, %v630, %v632
      %v634 = vsel %vm622, %v612, %v615
      %v635 = vsel %vm625, %v621, 1326507024
      %v636 = vsel %vm624, %v618, %v635
      %v637 = vsel %vm623, %v634, %v636
      %v638 = vshll.u32 %v598, 8
      %v639 = vand.u32 %v638, 65535
      %v640 = vshrl.u32 %v638, 16
      %v641 = vand.u32 %v637, 65535
      %v642 = vshrl.u32 %v637, 16
      %v643 = vmul.u32 %v639, %v641
      %v644 = vmul.u32 %v639, %v642
      %v645 = vmul.u32 %v640, %v641
      %v646 = vmul.u32 %v640, %v642
      %v647 = vshll.u32 %v644, 16
      %v648 = vshrl.u32 %v644, 16
      %v649 = vshll.u32 %v645, 16
      %v650 = vshrl.u32 %v645, 16
      %vm651 = vc.u32 %v643, %v647
      %v652 = vsel %vm651, 1, 0
      %v653 = vadd.s32 %v643, %v647
      %v654 = vadd.s32 %v646, %v652
      %vm655 = vc.u32 %v653, %v649
      %v656 = vsel %vm655, 1, 0
      %v657 = vadd.s32 %v653, %v649
      %v658 = vadd.s32 %v654, %v656
      %v659 = vadd.s32 %v658, %v648
      %v660 = vadd.s32 %v659, %v650
      %v661 = vand.u32 %v638, 65535
      %v662 = vshrl.u32 %v638, 16
      %v663 = vand.u32 %v633, 65535
      %v664 = vshrl.u32 %v633, 16
      %v665 = vmul.u32 %v661, %v663
      %v666 = vmul.u32 %v661, %v664
      %v667 = vmul.u32 %v662, %v663
      %v668 = vmul.u32 %v662, %v664
      %v669 = vshll.u32 %v666, 16
      %v670 = vshrl.u32 %v666, 16
      %v671 = vshll.u32 %v667, 16
      %v672 = vshrl.u32 %v667, 16
      %vm673 = vc.u32 %v665, %v669
      %v674 = vsel %vm673, 1, 0
      %v675 = vadd.s32 %v665, %v669
      %v676 = vadd.s32 %v668, %v674
      %vm677 = vc.u32 %v675, %v671
      %v678 = vsel %vm677, 1, 0
      %v679 = vadd.s32 %v675, %v671
      %v680 = vadd.s32 %v676, %v678
      %v681 = vadd.s32 %v680, %v670
      %v682 = vadd.s32 %v681, %v672
      %v683 = vmul.u32 %v638, %v629
      %v684 = vadd.s32 %v660, %v679
      %vm685 = vc.u32 %v660, %v679
      %v686 = vadd.s32 %v682, 1
      %v687 = vsel %vm685, %v686, %v682
      %v688 = vadd.s32 %v683, %v687
      %v689 = vadd.s32 %v688, 536870912
      %v690 = vshrl.u32 %v689, 30
      %v691 = vshll.u32 %v690, 30
      %v692 = vsub.s32 %v688, %v691
      %vm693 = vcmp.lt.s32.totalorder %v692, 0
      %v694 = vsub.s32 0, %v692
      %v695 = vsel %vm693, %v694, %v692
      %v696 = vclz %v695
      %v697 = vsub.s32 %v696, 2
      %vm698 = vcmp.gt.s32.totalorder 0, %v697
      %v699 = vsel %vm698, 0, %v697
      %v700 = vsub.s32 32, %v699
      %v701 = vshll.u32 %v692, %v699
      %v702 = vshrl.u32 %v684, %v700
      %v703 = vor.u32 %v701, %v702
      %v704 = vsub.s32 4294967266, %v699
      %v705 = vadd.s32 %v704, 127
      %v706 = vshll.u32 %v705, 23
      %v707 = vor.u32 4788187, %v706
      %v708 = vand.u32 2147483647, %v707
      %v710 = vcvt.s32.f32 %v703
      %v711 = vmul.f32 %v710, %v708
      %v712 = vxor.u32 %v711, 2147483648
      %v713 = vsel %vm592, %v712, %v711
      %v714 = vsub.s32 4, %v690
      %v715 = vsel %vm592, %v714, %v690
      %v716 = vsel %vm591, %v278, %v713
      %v717 = vsel %vm591, 0, %v715
      %v718 = vmul.f32 %v716, %v716
      %v719 = vmul.f32 %v718, -0.001358992
      %v720 = vadd.f32 %v719, 0.041655596
      %v721 = vmul.f32 %v718, %v720
      %v722 = vadd.f32 %v721, -0.4999988
      %v723 = vmul.f32 %v718, %v722
      %v724 = vadd.f32 1.0, %v723
      %v725 = vmul.f32 %v716, %v716
      %v726 = vmul.f32 %v725, -0.00019511016
      %v727 = vadd.f32 %v726, 0.008332121
      %v728 = vmul.f32 %v725, %v727
      %v729 = vadd.f32 %v728, -0.16666654
      %v730 = vmul.f32 %v725, %v729
      %v731 = vadd.f32 %v730, 1.0
      %v732 = vmul.f32 %v731, %v716
      %vm733 = vweird.f32 %v278
      %v734 = vand.u32 %v717, 3
      %vm735 = vcmp.lt.s32.totalorder %v734, 2
      %vm736 = vcmp.eq.s32.totalorder %v734, 0
      %v737 = vxor.u32 %v732, 2147483648
      %v738 = vsel %vm736, %v724, %v737
      %vm739 = vcmp.eq.s32.totalorder %v734, 2
      %v740 = vxor.u32 %v724, 2147483648
      %v741 = vsel %vm739, %v740, %v732
      %v742 = vsel %vm735, %v738, %v741
      %v743 = vsel %vm733, nan, %v742
      %v744 = vand.u32 2147483647, %v279
      %vm745 = vcmp.le.f32.partialorder %v744, 0.7853982
      %vm746 = vcmp.lt.s32.totalorder %v279, 0
      %v747 = vand.u32 %v279, 2139095040
      %v748 = vshrl.u32 %v747, 23
      %v749 = vsub.s32 %v748, 127
      %v750 = vand.u32 2147483647, %v279
      %v751 = vand.u32 %v750, 8388607
      %v752 = vor.u32 %v751, 8388608
      %v753 = vsub.s32 0, %v752
      %v754 = vadd.s32 %v749, 1
      %vm755 = vcmp.gt.s32.totalorder %v754, 0
      %v756 = vsel %vm755, %v754, 0
      %v757 = vshrl.u32 %v756, 5
      %v758 = vand.u32 %v756, 31
      %v759 = vsub.s32 32, %v758
      %v760 = vshrl.u32 683565275, %v759
      %v761 = vshll.u32 683565275, %v758
      %v762 = vshrl.u32 2475754826, %v759
      %v763 = vor.u32 %v761, %v762
      %v764 = vshll.u32 2475754826, %v758
      %v765 = vshrl.u32 2131351028, %v759
      %v766 = vor.u32 %v764, %v765
      %v767 = vshll.u32 2131351028, %v758
      %v768 = vshrl.u32 2102212464, %v759
      %v769 = vor.u32 %v767, %v768
      %v770 = vshll.u32 2102212464, %v758
      %v771 = vshrl.u32 920167782, %v759
      %v772 = vor.u32 %v770, %v771
      %v773 = vshll.u32 920167782, %v758
      %v774 = vshrl.u32 1326507024, %v759
      %v775 = vor.u32 %v773, %v774
      %vm776 = vcmp.lt.s32.totalorder %v757, 1
      %vm777 = vcmp.lt.s32.totalorder %v757, 2
      %vm778 = vcmp.lt.s32.totalorder %v757, 3
      %vm779 = vcmp.lt.s32.totalorder %v757, 4
      %v780 = vsel %vm776, %v760, %v763
      %v781 = vsel %vm779, %v769, 2102212464
      %v782 = vsel %vm778, %v766, %v781
      %v783 = vsel %vm777, %v780, %v782
      %v784 = vsel %vm776, %v763, %v766
      %v785 = vsel %vm779, %v772, 920167782
      %v786 = vsel %vm778, %v769, %v785
      %v787 = vsel %vm777, %v784, %v786
      %v788 = vsel %vm776, %v766, %v769
      %v789 = vsel %vm779, %v775, 1326507024
      %v790 = vsel %vm778, %v772, %v789
      %v791 = vsel %vm777, %v788, %v790
      %v792 = vshll.u32 %v752, 8
      %v793 = vand.u32 %v792, 65535
      %v794 = vshrl.u32 %v792, 16
      %v795 = vand.u32 %v791, 65535
      %v796 = vshrl.u32 %v791, 16
      %v797 = vmul.u32 %v793, %v795
      %v798 = vmul.u32 %v793, %v796
      %v799 = vmul.u32 %v794, %v795
      %v800 = vmul.u32 %v794, %v796
      %v801 = vshll.u32 %v798, 16
      %v802 = vshrl.u32 %v798, 16
      %v803 = vshll.u32 %v799, 16
      %v804 = vshrl.u32 %v799, 16
      %vm805 = vc.u32 %v797, %v801
      %v806 = vsel %vm805, 1, 0
      %v807 = vadd.s32 %v797, %v801
      %v808 = vadd.s32 %v800, %v806
      %vm809 = vc.u32 %v807, %v803
      %v810 = vsel %vm809, 1, 0
      %v811 = vadd.s32 %v807, %v803
      %v812 = vadd.s32 %v808, %v810
      %v813 = vadd.s32 %v812, %v802
      %v814 = vadd.s32 %v813, %v804
      %v815 = vand.u32 %v792, 65535
      %v816 = vshrl.u32 %v792, 16
      %v817 = vand.u32 %v787, 65535
      %v818 = vshrl.u32 %v787, 16
      %v819 = vmul.u32 %v815, %v817
      %v820 = vmul.u32 %v815, %v818
      %v821 = vmul.u32 %v816, %v817
      %v822 = vmul.u32 %v816, %v818
      %v823 = vshll.u32 %v820, 16
      %v824 = vshrl.u32 %v820, 16
      %v825 = vshll.u32 %v821, 16
      %v826 = vshrl.u32 %v821, 16
      %vm827 = vc.u32 %v819, %v823
      %v828 = vsel %vm827, 1, 0
      %v829 = vadd.s32 %v819, %v823
      %v830 = vadd.s32 %v822, %v828
      %vm831 = vc.u32 %v829, %v825
      %v832 = vsel %vm831, 1, 0
      %v833 = vadd.s32 %v829, %v825
      %v834 = vadd.s32 %v830, %v832
      %v835 = vadd.s32 %v834, %v824
      %v836 = vadd.s32 %v835, %v826
      %v837 = vmul.u32 %v792, %v783
      %v838 = vadd.s32 %v814, %v833
      %vm839 = vc.u32 %v814, %v833
      %v840 = vadd.s32 %v836, 1
      %v841 = vsel %vm839, %v840, %v836
      %v842 = vadd.s32 %v837, %v841
      %v843 = vadd.s32 %v842, 536870912
      %v844 = vshrl.u32 %v843, 30
      %v845 = vshll.u32 %v844, 30
      %v846 = vsub.s32 %v842, %v845
      %vm847 = vcmp.lt.s32.totalorder %v846, 0
      %v848 = vsub.s32 0, %v846
      %v849 = vsel %vm847, %v848, %v846
      %v850 = vclz %v849
      %v851 = vsub.s32 %v850, 2
      %vm852 = vcmp.gt.s32.totalorder 0, %v851
      %v853 = vsel %vm852, 0, %v851
      %v854 = vsub.s32 32, %v853
      %v855 = vshll.u32 %v846, %v853
      %v856 = vshrl.u32 %v838, %v854
      %v857 = vor.u32 %v855, %v856
      %v858 = vsub.s32 4294967266, %v853
      %v859 = vadd.s32 %v858, 127
      %v860 = vshll.u32 %v859, 23
      %v861 = vor.u32 4788187, %v860
      %v862 = vand.u32 2147483647, %v861
      %v864 = vcvt.s32.f32 %v857
      %v865 = vmul.f32 %v864, %v862
      %v866 = vxor.u32 %v865, 2147483648
      %v867 = vsel %vm746, %v866, %v865
      %v868 = vsub.s32 4, %v844
      %v869 = vsel %vm746, %v868, %v844
      %v870 = vsel %vm745, %v279, %v867
      %v871 = vsel %vm745, 0, %v869
      %v872 = vmul.f32 %v870, %v870
      %v873 = vmul.f32 %v872, -0.001358992
      %v874 = vadd.f32 %v873, 0.041655596
      %v875 = vmul.f32 %v872, %v874
      %v876 = vadd.f32 %v875, -0.4999988
      %v877 = vmul.f32 %v872, %v876
      %v878 = vadd.f32 1.0, %v877
      %v879 = vmul.f32 %v870, %v870
      %v880 = vmul.f32 %v879, -0.00019511016
      %v881 = vadd.f32 %v880, 0.008332121
      %v882 = vmul.f32 %v879, %v881
      %v883 = vadd.f32 %v882, -0.16666654
      %v884 = vmul.f32 %v879, %v883
      %v885 = vadd.f32 %v884, 1.0
      %v886 = vmul.f32 %v885, %v870
      %vm887 = vweird.f32 %v279
      %v888 = vand.u32 %v871, 3
      %vm889 = vcmp.lt.s32.totalorder %v888, 2
      %vm890 = vcmp.eq.s32.totalorder %v888, 0
      %v891 = vxor.u32 %v886, 2147483648
      %v892 = vsel %vm890, %v878, %v891
      %vm893 = vcmp.eq.s32.totalorder %v888, 2
      %v894 = vxor.u32 %v878, 2147483648
      %v895 = vsel %vm893, %v894, %v886
      %v896 = vsel %vm889, %v892, %v895
      %v897 = vsel %vm887, nan, %v896
      %v898 = vmul.f32 %v434, 2.0
      %v899 = vmul.f32 %v589, 2.0
      %v900 = vmul.f32 %v898, %v743
      %v901 = vmul.f32 %v899, %v897
      %v902 = vmul.f32 %v898, %v434
      %v903 = vmul.f32 %v899, %v589
      %v904 = vsub.f32 1.0, %v902
      %v905 = vsub.f32 1.0, %v903
      %v906 = vmul.f32 %v900, 2.0
      %v907 = vmul.f32 %v901, 2.0
      %v908 = vmul.f32 %v906, %v904
      %v909 = vmul.f32 %v907, %v905
      %v910 = vmul.f32 %v906, %v900
      %v911 = vmul.f32 %v907, %v901
      %v912 = vsub.f32 1.0, %v910
      %v913 = vsub.f32 1.0, %v911
      %v914 = vmul.f32 %v908, 2.0
      %v915 = vmul.f32 %v909, 2.0
      %v916 = vmul.f32 %v914, %v912
      %v917 = vmul.f32 %v915, %v913
      %v918 = vmul.f32 %v914, %v908
      %v919 = vmul.f32 %v915, %v909
      %v920 = vsub.f32 1.0, %v918
      %v921 = vsub.f32 1.0, %v919
      %v922 = vmul.f32 %v916, 2.0
      %v923 = vmul.f32 %v917, 2.0
      %v924 = vmul.f32 %v922, %v920
      %v925 = vmul.f32 %v923, %v921
      %v926 = vmul.f32 %v922, %v916
      %v927 = vmul.f32 %v923, %v917
      %v928 = vsub.f32 1.0, %v926
      %v929 = vsub.f32 1.0, %v927
      %930 = vst [vmem:[#allocation1] ss:$4 sm:$0xff] %v238
      %v931 = vld.sshfl [vmem:[#allocation1] sm:$0xff pattern:$0x73625140]
      %v932 = vld.sshfl [vmem:[#allocation1 + $0x8] sm:$0xff pattern:$0x73625140]
      %v935 = vsel %vm269, %v931, 0.0
      %v936 = vsel %vm269, %v932, 0.0
      %v937 = vpack.c.bf16 %v434, %v935
      %v938 = vpack.c.bf16 %v589, %v936
      %v939 = vpack.c.bf16 %v743, %v924
      %v940 = vpack.c.bf16 %v897, %v925
      %v941 = vpack.c.bf16 %v928, %v928
      %v942 = vpack.c.bf16 %v929, %v929
      %v943 = vld [vmem:[%s1] sm:$0xf]
      %v944 = vld [vmem:[%s1 + $0x4] sm:$0xf]
      %v945 = vld [vmem:[%s1 + $0x8] sm:$0xf]
      %v946 = vld [vmem:[%s1 + $0xc] sm:$0xf]
      %v947 = vld [vmem:[%s3] sm:$0xff]
      %v948 = vld [vmem:[%s3 + $0x8] sm:$0xff]
      %v949 = vld [vmem:[%s3 + $0x10] sm:$0xff]
      %v950 = vld [vmem:[%s3 + $0x18] sm:$0xff]
      %952 = vset.pattern.permute.xlu0 0
      %953 = vperm.xlu0 %952, %v947
      %v954 = vpop.permute.xlu0 %953
      %957 = vset.pattern.permute.xlu0 0
      %958 = vperm.xlu0 %957, %v948
      %v959 = vpop.permute.xlu0 %958
      %962 = vset.pattern.permute.xlu0 0
      %963 = vperm.xlu0 %962, %v949
      %v964 = vpop.permute.xlu0 %963
      %967 = vset.pattern.permute.xlu0 0
      %968 = vperm.xlu0 %967, %v950
      %v969 = vpop.permute.xlu0 %968
      %v975 = vunpack.c.l.b16 %v943
      %v976 = vunpack.c.l.b16 %v944
      %v977 = vunpack.c.l.b16 %v945
      %v978 = vunpack.c.l.b16 %v946
      %v979 = vpack.c.b16 %v976, %v975
      %v980 = vpack.c.b16 %v978, %v977
      %vm981 = vcmask 326656
      %v983 = vsel %vm981, %v979, 0
      %v986 = vsel %vm981, %v980, 0
      %v989 = vsel %vm272, %v941, 0
      %v992 = vsel %vm272, %v942, 0
      %994 = vmatpush.bf16.msra.mxu0 0
      %995 = vmatpush.bf16.msra.mxu0 0
      %996 = vmatpush.bf16.msra.mxu0 0
      %997 = vmatpush.bf16.msra.mxu0 0
      %998 = vmatpush.bf16.msra.mxu0 0
      %999 = vmatpush.bf16.msra.mxu0 %v989
      %1000 = vmatpush.bf16.msra.mxu0 %v939
      %1001 = vmatpush.bf16.msra.mxu0 %v937
      %1002 = vmatmul.bf16.gmra.mxu0 %v983
      %v1003 = vpop.f32.mrf.mxu0
      %v1004 = vadd.f32 %v954, %v1003
      %v1005 = vpop.f32.mrf.mxu0
      %v1006 = vadd.f32 %v959, %v1005
      %1007 = vmatmul.bf16.gmra.mxu0 %v986
      %v1008 = vpop.f32.mrf.mxu0
      %v1009 = vadd.f32 %v964, %v1008
      %v1010 = vpop.f32.mrf.mxu0
      %v1011 = vadd.f32 %v969, %v1010
      %1012 = vdwg.mxu0
      %1013 = vmatpush.bf16.msra.mxu0 0
      %1014 = vmatpush.bf16.msra.mxu0 0
      %1015 = vmatpush.bf16.msra.mxu0 0
      %1016 = vmatpush.bf16.msra.mxu0 0
      %1017 = vmatpush.bf16.msra.mxu0 0
      %1018 = vmatpush.bf16.msra.mxu0 %v992
      %1019 = vmatpush.bf16.msra.mxu0 %v940
      %1020 = vmatpush.bf16.msra.mxu0 %v938
      %1021 = vmatmul.bf16.gmra.mxu0 %v983
      %v1022 = vpop.f32.mrf.mxu0
      %v1023 = vadd.f32 %v954, %v1022
      %v1024 = vpop.f32.mrf.mxu0
      %v1025 = vadd.f32 %v959, %v1024
      %1026 = vmatmul.bf16.gmra.mxu0 %v986
      %v1027 = vpop.f32.mrf.mxu0
      %v1028 = vadd.f32 %v964, %v1027
      %v1029 = vpop.f32.mrf.mxu0
      %v1030 = vadd.f32 %v969, %v1029
      %1031 = vdwg.mxu0
      %v1032 = vmax.f32 %v1004, 0.0
      %v1033 = vmax.f32 %v1023, 0.0
      %v1034 = vmax.f32 %v1006, 0.0
      %v1035 = vmax.f32 %v1025, 0.0
      %v1036 = vmax.f32 %v1009, 0.0
      %v1037 = vmax.f32 %v1028, 0.0
      %v1038 = vmax.f32 %v1011, 0.0
      %v1039 = vmax.f32 %v1030, 0.0
      %v1040 = vld [vmem:[%s2] sm:$0xf]
      %v1041 = vld [vmem:[%s2 + $0x4] sm:$0xf]
      %v1042 = vld [vmem:[%s2 + $0x8] sm:$0xf]
      %v1043 = vld [vmem:[%s2 + $0xc] sm:$0xf]
      %v1044 = vpack.c.bf16 %v1034, %v1032
      %v1045 = vpack.c.bf16 %v1035, %v1033
      %v1046 = vpack.c.bf16 %v1038, %v1036
      %v1047 = vpack.c.bf16 %v1039, %v1037
      %s1048 = scalar_lea.vmem %s3, 32
      %v1049 = vld [vmem:[%s1048] sm:$0xff]
      %v1050 = vld [vmem:[%s1048 + $0x8] sm:$0xff]
      %v1051 = vld [vmem:[%s1048 + $0x10] sm:$0xff]
      %v1052 = vld [vmem:[%s1048 + $0x18] sm:$0xff]
      %1054 = vset.pattern.permute.xlu0 0
      %1055 = vperm.xlu0 %1054, %v1049
      %v1056 = vpop.permute.xlu0 %1055
      %1059 = vset.pattern.permute.xlu0 0
      %1060 = vperm.xlu0 %1059, %v1050
      %v1061 = vpop.permute.xlu0 %1060
      %1064 = vset.pattern.permute.xlu0 0
      %1065 = vperm.xlu0 %1064, %v1051
      %v1066 = vpop.permute.xlu0 %1065
      %1069 = vset.pattern.permute.xlu0 0
      %1070 = vperm.xlu0 %1069, %v1052
      %v1071 = vpop.permute.xlu0 %1070
      %v1077 = vunpack.c.l.b16 %v1040
      %v1078 = vunpack.c.l.b16 %v1041
      %v1079 = vunpack.c.l.b16 %v1042
      %v1080 = vunpack.c.l.b16 %v1043
      %v1081 = vpack.c.b16 %v1078, %v1077
      %v1082 = vpack.c.b16 %v1080, %v1079
      %vm1083 = vcmask 261120
      %v1085 = vsel %vm1083, %v1081, 0
      %v1088 = vsel %vm1083, %v1082, 0
      %1090 = vmatpush.bf16.msra.mxu0 0
      %1091 = vmatpush.bf16.msra.mxu0 0
      %1092 = vmatpush.bf16.msra.mxu0 0
      %1093 = vmatpush.bf16.msra.mxu0 0
      %1094 = vmatpush.bf16.msra.mxu0 0
      %1095 = vmatpush.bf16.msra.mxu0 0
      %1096 = vmatpush.bf16.msra.mxu0 %v1046
      %1097 = vmatpush.bf16.msra.mxu0 %v1044
      %1098 = vmatmul.bf16.gmra.mxu0 %v1085
      %v1099 = vpop.f32.mrf.mxu0
      %v1100 = vadd.f32 %v1056, %v1099
      %v1101 = vpop.f32.mrf.mxu0
      %v1102 = vadd.f32 %v1061, %v1101
      %1103 = vmatmul.bf16.gmra.mxu0 %v1088
      %v1104 = vpop.f32.mrf.mxu0
      %v1105 = vadd.f32 %v1066, %v1104
      %v1106 = vpop.f32.mrf.mxu0
      %v1107 = vadd.f32 %v1071, %v1106
      %1108 = vdwg.mxu0
      %1109 = vmatpush.bf16.msra.mxu0 0
      %1110 = vmatpush.bf16.msra.mxu0 0
      %1111 = vmatpush.bf16.msra.mxu0 0
      %1112 = vmatpush.bf16.msra.mxu0 0
      %1113 = vmatpush.bf16.msra.mxu0 0
      %1114 = vmatpush.bf16.msra.mxu0 0
      %1115 = vmatpush.bf16.msra.mxu0 %v1047
      %1116 = vmatpush.bf16.msra.mxu0 %v1045
      %1117 = vmatmul.bf16.gmra.mxu0 %v1085
      %v1118 = vpop.f32.mrf.mxu0
      %v1119 = vadd.f32 %v1056, %v1118
      %v1120 = vpop.f32.mrf.mxu0
      %v1121 = vadd.f32 %v1061, %v1120
      %1122 = vmatmul.bf16.gmra.mxu0 %v1088
      %v1123 = vpop.f32.mrf.mxu0
      %v1124 = vadd.f32 %v1066, %v1123
      %v1125 = vpop.f32.mrf.mxu0
      %v1126 = vadd.f32 %v1071, %v1125
      %1127 = vdwg.mxu0
      %v1128 = vmax.f32 %v1100, 0.0
      %v1129 = vmax.f32 %v1119, 0.0
      %v1130 = vmax.f32 %v1102, 0.0
      %v1131 = vmax.f32 %v1121, 0.0
      %v1132 = vmax.f32 %v1105, 0.0
      %v1133 = vmax.f32 %v1124, 0.0
      %v1134 = vmax.f32 %v1107, 0.0
      %v1135 = vmax.f32 %v1126, 0.0
      %s1136 = scalar_lea.vmem %s2, 16
      %v1137 = vld [vmem:[%s1136] sm:$0xf]
      %v1138 = vld [vmem:[%s1136 + $0x4] sm:$0xf]
      %v1139 = vld [vmem:[%s1136 + $0x8] sm:$0xf]
      %v1140 = vld [vmem:[%s1136 + $0xc] sm:$0xf]
      %v1141 = vpack.c.bf16 %v1130, %v1128
      %v1142 = vpack.c.bf16 %v1131, %v1129
      %v1143 = vpack.c.bf16 %v1134, %v1132
      %v1144 = vpack.c.bf16 %v1135, %v1133
      %s1145 = scalar_lea.vmem %s3, 64
      %v1146 = vld [vmem:[%s1145] sm:$0xff]
      %v1147 = vld [vmem:[%s1145 + $0x8] sm:$0xff]
      %v1148 = vld [vmem:[%s1145 + $0x10] sm:$0xff]
      %v1149 = vld [vmem:[%s1145 + $0x18] sm:$0xff]
      %1151 = vset.pattern.permute.xlu0 0
      %1152 = vperm.xlu0 %1151, %v1146
      %v1153 = vpop.permute.xlu0 %1152
      %1156 = vset.pattern.permute.xlu0 0
      %1157 = vperm.xlu0 %1156, %v1147
      %v1158 = vpop.permute.xlu0 %1157
      %1161 = vset.pattern.permute.xlu0 0
      %1162 = vperm.xlu0 %1161, %v1148
      %v1163 = vpop.permute.xlu0 %1162
      %1166 = vset.pattern.permute.xlu0 0
      %1167 = vperm.xlu0 %1166, %v1149
      %v1168 = vpop.permute.xlu0 %1167
      %v1174 = vunpack.c.l.b16 %v1137
      %v1175 = vunpack.c.l.b16 %v1138
      %v1176 = vunpack.c.l.b16 %v1139
      %v1177 = vunpack.c.l.b16 %v1140
      %v1178 = vpack.c.b16 %v1175, %v1174
      %v1179 = vpack.c.b16 %v1177, %v1176
      %v1181 = vsel %vm1083, %v1178, 0
      %v1184 = vsel %vm1083, %v1179, 0
      %1186 = vmatpush.bf16.msra.mxu0 0
      %1187 = vmatpush.bf16.msra.mxu0 0
      %1188 = vmatpush.bf16.msra.mxu0 0
      %1189 = vmatpush.bf16.msra.mxu0 0
      %1190 = vmatpush.bf16.msra.mxu0 0
      %1191 = vmatpush.bf16.msra.mxu0 0
      %1192 = vmatpush.bf16.msra.mxu0 %v1143
      %1193 = vmatpush.bf16.msra.mxu0 %v1141
      %1194 = vmatmul.bf16.gmra.mxu0 %v1181
      %v1195 = vpop.f32.mrf.mxu0
      %v1196 = vadd.f32 %v1153, %v1195
      %v1197 = vpop.f32.mrf.mxu0
      %v1198 = vadd.f32 %v1158, %v1197
      %1199 = vmatmul.bf16.gmra.mxu0 %v1184
      %v1200 = vpop.f32.mrf.mxu0
      %v1201 = vadd.f32 %v1163, %v1200
      %v1202 = vpop.f32.mrf.mxu0
      %v1203 = vadd.f32 %v1168, %v1202
      %1204 = vdwg.mxu0
      %1205 = vmatpush.bf16.msra.mxu0 0
      %1206 = vmatpush.bf16.msra.mxu0 0
      %1207 = vmatpush.bf16.msra.mxu0 0
      %1208 = vmatpush.bf16.msra.mxu0 0
      %1209 = vmatpush.bf16.msra.mxu0 0
      %1210 = vmatpush.bf16.msra.mxu0 0
      %1211 = vmatpush.bf16.msra.mxu0 %v1144
      %1212 = vmatpush.bf16.msra.mxu0 %v1142
      %1213 = vmatmul.bf16.gmra.mxu0 %v1181
      %v1214 = vpop.f32.mrf.mxu0
      %v1215 = vadd.f32 %v1153, %v1214
      %v1216 = vpop.f32.mrf.mxu0
      %v1217 = vadd.f32 %v1158, %v1216
      %1218 = vmatmul.bf16.gmra.mxu0 %v1184
      %v1219 = vpop.f32.mrf.mxu0
      %v1220 = vadd.f32 %v1163, %v1219
      %v1221 = vpop.f32.mrf.mxu0
      %v1222 = vadd.f32 %v1168, %v1221
      %1223 = vdwg.mxu0
      %v1224 = vmax.f32 %v1196, 0.0
      %v1225 = vmax.f32 %v1215, 0.0
      %v1226 = vmax.f32 %v1198, 0.0
      %v1227 = vmax.f32 %v1217, 0.0
      %v1228 = vmax.f32 %v1201, 0.0
      %v1229 = vmax.f32 %v1220, 0.0
      %v1230 = vmax.f32 %v1203, 0.0
      %v1231 = vmax.f32 %v1222, 0.0
      %s1232 = scalar_lea.vmem %s2, 32
      %v1233 = vld [vmem:[%s1232] sm:$0xf]
      %v1234 = vld [vmem:[%s1232 + $0x4] sm:$0xf]
      %v1235 = vld [vmem:[%s1232 + $0x8] sm:$0xf]
      %v1236 = vld [vmem:[%s1232 + $0xc] sm:$0xf]
      %v1237 = vpack.c.bf16 %v1226, %v1224
      %v1238 = vpack.c.bf16 %v1227, %v1225
      %v1239 = vpack.c.bf16 %v1230, %v1228
      %v1240 = vpack.c.bf16 %v1231, %v1229
      %s1241 = scalar_lea.vmem %s3, 96
      %v1242 = vld [vmem:[%s1241] sm:$0xff]
      %v1243 = vld [vmem:[%s1241 + $0x8] sm:$0xff]
      %v1244 = vld [vmem:[%s1241 + $0x10] sm:$0xff]
      %v1245 = vld [vmem:[%s1241 + $0x18] sm:$0xff]
      %1247 = vset.pattern.permute.xlu0 0
      %1248 = vperm.xlu0 %1247, %v1242
      %v1249 = vpop.permute.xlu0 %1248
      %1252 = vset.pattern.permute.xlu0 0
      %1253 = vperm.xlu0 %1252, %v1243
      %v1254 = vpop.permute.xlu0 %1253
      %1257 = vset.pattern.permute.xlu0 0
      %1258 = vperm.xlu0 %1257, %v1244
      %v1259 = vpop.permute.xlu0 %1258
      %1262 = vset.pattern.permute.xlu0 0
      %1263 = vperm.xlu0 %1262, %v1245
      %v1264 = vpop.permute.xlu0 %1263
      %v1270 = vunpack.c.l.b16 %v1233
      %v1271 = vunpack.c.l.b16 %v1234
      %v1272 = vunpack.c.l.b16 %v1235
      %v1273 = vunpack.c.l.b16 %v1236
      %v1274 = vpack.c.b16 %v1271, %v1270
      %v1275 = vpack.c.b16 %v1273, %v1272
      %v1277 = vsel %vm1083, %v1274, 0
      %v1280 = vsel %vm1083, %v1275, 0
      %1282 = vmatpush.bf16.msra.mxu0 0
      %1283 = vmatpush.bf16.msra.mxu0 0
      %1284 = vmatpush.bf16.msra.mxu0 0
      %1285 = vmatpush.bf16.msra.mxu0 0
      %1286 = vmatpush.bf16.msra.mxu0 0
      %1287 = vmatpush.bf16.msra.mxu0 0
      %1288 = vmatpush.bf16.msra.mxu0 %v1239
      %1289 = vmatpush.bf16.msra.mxu0 %v1237
      %1290 = vmatmul.bf16.gmra.mxu0 %v1277
      %v1291 = vpop.f32.mrf.mxu0
      %v1292 = vadd.f32 %v1249, %v1291
      %v1293 = vpop.f32.mrf.mxu0
      %v1294 = vadd.f32 %v1254, %v1293
      %1295 = vmatmul.bf16.gmra.mxu0 %v1280
      %v1296 = vpop.f32.mrf.mxu0
      %v1297 = vadd.f32 %v1259, %v1296
      %v1298 = vpop.f32.mrf.mxu0
      %v1299 = vadd.f32 %v1264, %v1298
      %1300 = vdwg.mxu0
      %1301 = vmatpush.bf16.msra.mxu0 0
      %1302 = vmatpush.bf16.msra.mxu0 0
      %1303 = vmatpush.bf16.msra.mxu0 0
      %1304 = vmatpush.bf16.msra.mxu0 0
      %1305 = vmatpush.bf16.msra.mxu0 0
      %1306 = vmatpush.bf16.msra.mxu0 0
      %1307 = vmatpush.bf16.msra.mxu0 %v1240
      %1308 = vmatpush.bf16.msra.mxu0 %v1238
      %1309 = vmatmul.bf16.gmra.mxu0 %v1277
      %v1310 = vpop.f32.mrf.mxu0
      %v1311 = vadd.f32 %v1249, %v1310
      %v1312 = vpop.f32.mrf.mxu0
      %v1313 = vadd.f32 %v1254, %v1312
      %1314 = vmatmul.bf16.gmra.mxu0 %v1280
      %v1315 = vpop.f32.mrf.mxu0
      %v1316 = vadd.f32 %v1259, %v1315
      %v1317 = vpop.f32.mrf.mxu0
      %v1318 = vadd.f32 %v1264, %v1317
      %1319 = vdwg.mxu0
      %v1320 = vmax.f32 %v1292, 0.0
      %v1321 = vmax.f32 %v1311, 0.0
      %v1322 = vmax.f32 %v1294, 0.0
      %v1323 = vmax.f32 %v1313, 0.0
      %v1324 = vmax.f32 %v1297, 0.0
      %v1325 = vmax.f32 %v1316, 0.0
      %v1326 = vmax.f32 %v1299, 0.0
      %v1327 = vmax.f32 %v1318, 0.0
      %s1328 = scalar_lea.vmem %s2, 48
      %v1329 = vld [vmem:[%s1328] sm:$0xf]
      %v1330 = vld [vmem:[%s1328 + $0x4] sm:$0xf]
      %v1331 = vld [vmem:[%s1328 + $0x8] sm:$0xf]
      %v1332 = vld [vmem:[%s1328 + $0xc] sm:$0xf]
      %v1333 = vpack.c.bf16 %v1322, %v1320
      %v1334 = vpack.c.bf16 %v1323, %v1321
      %v1335 = vpack.c.bf16 %v1326, %v1324
      %v1336 = vpack.c.bf16 %v1327, %v1325
      %s1337 = scalar_lea.vmem %s3, 128
      %v1338 = vld [vmem:[%s1337] sm:$0xff]
      %v1339 = vld [vmem:[%s1337 + $0x8] sm:$0xff]
      %v1340 = vld [vmem:[%s1337 + $0x10] sm:$0xff]
      %v1341 = vld [vmem:[%s1337 + $0x18] sm:$0xff]
      %1343 = vset.pattern.permute.xlu0 0
      %1344 = vperm.xlu0 %1343, %v1338
      %v1345 = vpop.permute.xlu0 %1344
      %1348 = vset.pattern.permute.xlu0 0
      %1349 = vperm.xlu0 %1348, %v1339
      %v1350 = vpop.permute.xlu0 %1349
      %1352 = vset.pattern.permute.xlu0 0
      %1353 = vperm.xlu0 %1352, %v1340
      %v1354 = vpop.permute.xlu0 %1353
      %1356 = vset.pattern.permute.xlu0 0
      %1357 = vperm.xlu0 %1356, %v1341
      %v1358 = vpop.permute.xlu0 %1357
      %v1363 = vunpack.c.l.b16 %v1329
      %v1364 = vunpack.c.l.b16 %v1330
      %v1365 = vunpack.c.l.b16 %v1331
      %v1366 = vunpack.c.l.b16 %v1332
      %v1367 = vpack.c.b16 %v1364, %v1363
      %v1368 = vpack.c.b16 %v1366, %v1365
      %v1370 = vsel %vm1083, %v1367, 0
      %v1373 = vsel %vm1083, %v1368, 0
      %1375 = vmatpush.bf16.msra.mxu0 0
      %1376 = vmatpush.bf16.msra.mxu0 0
      %1377 = vmatpush.bf16.msra.mxu0 0
      %1378 = vmatpush.bf16.msra.mxu0 0
      %1379 = vmatpush.bf16.msra.mxu0 0
      %1380 = vmatpush.bf16.msra.mxu0 0
      %1381 = vmatpush.bf16.msra.mxu0 %v1335
      %1382 = vmatpush.bf16.msra.mxu0 %v1333
      %1383 = vmatmul.bf16.gmra.mxu0 %v1370
      %v1384 = vpop.f32.mrf.mxu0
      %v1385 = vadd.f32 %v1345, %v1384
      %v1386 = vpop.f32.mrf.mxu0
      %1387 = vmatmul.bf16.gmra.mxu0 %v1373
      %v1388 = vpop.f32.mrf.mxu0
      %v1389 = vpop.f32.mrf.mxu0
      %1390 = vdwg.mxu0
      %1391 = vmatpush.bf16.msra.mxu0 0
      %1392 = vmatpush.bf16.msra.mxu0 0
      %1393 = vmatpush.bf16.msra.mxu0 0
      %1394 = vmatpush.bf16.msra.mxu0 0
      %1395 = vmatpush.bf16.msra.mxu0 0
      %1396 = vmatpush.bf16.msra.mxu0 0
      %1397 = vmatpush.bf16.msra.mxu0 %v1336
      %1398 = vmatpush.bf16.msra.mxu0 %v1334
      %1399 = vmatmul.bf16.gmra.mxu0 %v1370
      %v1400 = vpop.f32.mrf.mxu0
      %v1401 = vadd.f32 %v1345, %v1400
      %v1402 = vpop.f32.mrf.mxu0
      %1403 = vmatmul.bf16.gmra.mxu0 %v1373
      %v1404 = vpop.f32.mrf.mxu0
      %v1405 = vpop.f32.mrf.mxu0
      %1406 = vdwg.mxu0
      %v1407 = vxor.u32 %v1385, 2147483648
      %v1408 = vxor.u32 %v1401, 2147483648
      %v1409 = vmul.f32 %v1407, 1.442695
      %v1410 = vpow.pop %v1409
      %v1411 = vmul.f32 %v1408, 1.442695
      %v1412 = vpow.pop %v1411
      %v1413 = vadd.f32 %v1410, 1.0
      %v1414 = vadd.f32 %v1412, 1.0
      %v1415 = vrcp.pop %v1413
      %v1416 = vmul.f32 %v1413, %v1415
      %v1417 = vsub.f32 1.0, %v1416
      %v1418 = vmul.f32 %v1415, %v1417
      %v1419 = vadd.f32 %v1415, %v1418
      %vm1420 = vweird.f32 %v1413
      %vm1421 = vweird.f32 %v1415
      %vm1422 = vmor %vm1420, %vm1421
      %v1423 = vsel %vm1422, %v1415, %v1419
      %v1424 = vand.u32 2147483647, %v1413
      %vm1425 = vcmp.eq.f32.partialorder %v1424, 8.507059e+37
      %v1426 = vand.u32 %v1413, 2147483648
      %v1427 = vor.u32 1.1754944e-38, %v1426
      %v1428 = vsel %vm1425, %v1427, %v1423
      %v1429 = vmul.f32 1.0, %v1428
      %v1430 = vrcp.pop %v1414
      %v1431 = vmul.f32 %v1414, %v1430
      %v1432 = vsub.f32 1.0, %v1431
      %v1433 = vmul.f32 %v1430, %v1432
      %v1434 = vadd.f32 %v1430, %v1433
      %vm1435 = vweird.f32 %v1414
      %vm1436 = vweird.f32 %v1430
      %vm1437 = vmor %vm1435, %vm1436
      %v1438 = vsel %vm1437, %v1430, %v1434
      %v1439 = vand.u32 2147483647, %v1414
      %vm1440 = vcmp.eq.f32.partialorder %v1439, 8.507059e+37
      %v1441 = vand.u32 %v1414, 2147483648
      %v1442 = vor.u32 1.1754944e-38, %v1441
      %v1443 = vsel %vm1440, %v1442, %v1438
      %v1444 = vmul.f32 1.0, %v1443
      %v1447 = vrot.slane %v1444, 4
      %v1448 = vsel %vm272, %v1429, %v1447
      %1450 = vst [vmem:[%s235] sm:$0x77] %v1448
      %s1451 = smul.u32 2, %s20
      %p1452 = scmp.lt.s32.totalorder %s19, 1
      %s1453 = scalar_select %p1452, %s19, 1
      %p1454 = scmp.lt.s32.totalorder %s1451, 1
      %s1455 = scalar_select %p1454, %s1451, 1
      %s1456 = smul.addr %s1453, 2
      %s1457 = sadd.s32 %s1455, %s1456
      %s1458 = smul.addr %s1457, 4
      %s1459 = scalar_lea.vmem %s4, %s1458
      // Predicated region
      $region37: #{tpu_custom_call.1} parent=35 // pred_check
        %p1460 = pneg %p138
      $region38: #{tpu_custom_call.1} parent=35 // pred_check_branch
        %1462 = sbr.rel (%p1460) target = $region40
      $region39: #{tpu_custom_call.1} parent=35 // pred_region
        %s1463 = smul.u32 2, %s20
      $region40: #{tpu_custom_call.1} parent=35 // pred_fallthru
        _
    $region36: #{tpu_custom_call.1} parent=5 // pred_fallthru
      _
    %p1464 = scmp.le.s32.totalorder 2, %s10
    // Predicated region
    $region41: #{tpu_custom_call.1} parent=5 // pred_check
      %p1465 = pneg %p1464
    $region42: #{tpu_custom_call.1} parent=5 // pred_check_branch
      %1467 = sbr.rel (%p1465) target = $region44
    $region43: #{tpu_custom_call.1} parent=5 // pred_region
      %s1468 = ssub.s32 %s10, 2
      // Predicated region
      $region45: #{tpu_custom_call.1} parent=43 // pred_check
        %p1469 = pneg %p144
      $region46: #{tpu_custom_call.1} parent=43 // pred_check_branch
        %1471 = sbr.rel (%p1469) target = $region48
      $region47: #{tpu_custom_call.1} parent=43 // pred_region
        %s1472 = smul.u32 2, %s22
        %p1473 = scmp.lt.s32.totalorder %s21, 1
        %s1474 = scalar_select %p1473, %s21, 1
        %p1475 = scmp.lt.s32.totalorder %s1472, 1
        %s1476 = scalar_select %p1475, %s1472, 1
        %s1477 = smul.addr %s1474, 2
        %s1478 = sadd.s32 %s1476, %s1477
        %s1479 = smul.addr %s1478, 4
        %s1480 = scalar_lea.vmem %s4, %s1479
      $region48: #{tpu_custom_call.1} parent=43 // pred_fallthru
        _
    $region44: #{tpu_custom_call.1} parent=5 // pred_fallthru
      _
  $region6: #{tpu_custom_call.1} parent=0 // loop_footer
    %s14 = sadd.s32 1, %s10
  $region7: #{tpu_custom_call.1} parent=0 // loop_footer_branch
    %9 = sbr.rel target = $region3
  $region8: #{tpu_custom_call.1} parent=0 // loop_exit
    _

</llo_original>
